<compile_context>
chip_gen: v6e
topology: v6e:2x2x1
jax: 0.10.0
libtpu: 0.0.40
codegen_flags: <defaults>
</compile_context>

<pallas_src>
import functools

import jax
import jax.numpy as jnp
from jax.experimental import pallas as pl
from jax.experimental.pallas import tpu as pltpu


def _decoder_kernel(z_ref, w3_ref, b3_ref, w4_ref, b4_ref, o_ref):
    # fc3 + ReLU  (bf16 inputs to the MXU, f32 accumulate)
    z = z_ref[...].astype(jnp.bfloat16)
    h = jnp.dot(z, w3_ref[...], preferred_element_type=jnp.float32)
    h = jnp.maximum(h + b3_ref[...], 0.0)          # (TM, 1024) + (1, 1024) broadcast, f32
    # fc4 + sigmoid
    h = h.astype(jnp.bfloat16)
    y = jnp.dot(h, w4_ref[...], preferred_element_type=jnp.float32)
    y = y + b4_ref[...]                            # (TM, OUT_pad) + (1, OUT_pad) broadcast
    o_ref[...] = jax.nn.sigmoid(y).astype(o_ref.dtype)


def _round_up(x, m):
    return ((x + m - 1) // m) * m


@functools.partial(jax.jit, static_argnames=("tm",))
def fc_decoder_forward(z, w3, b3, w4, b4, *, tm=256):
    """z: (B, E) f32; w3: (E, 1024) bf16; b3: (1, 1024) f32;
    w4: (1024, 784) bf16; b4: (1, 784) f32.  Returns (B, 784) f32."""
    B, E = z.shape
    H = w3.shape[1]          # 1024
    OUT = w4.shape[1]        # 784

    # --- pad fc4 output dim to a multiple of 128 (lane-dense stores, clean MXU N) ---
    OUT_pad = _round_up(OUT, 128)                  # 784 -> 896
    if OUT_pad != OUT:
        w4 = jnp.pad(w4, ((0, 0), (0, OUT_pad - OUT)))
        b4 = jnp.pad(b4, ((0, 0), (0, OUT_pad - OUT)))

    # --- pad / tile the batch dimension ---
    B_pad = _round_up(B, 8)                        # sublane alignment
    TM = min(tm, B_pad)                            # batch tile (multiple of 8)
    B_pad = _round_up(B_pad, TM)
    if B_pad != B:
        z = jnp.pad(z, ((0, B_pad - B), (0, 0)))

    grid = (B_pad // TM,)

    # Advisory cost estimate: lets XLA overlap this short DMA-bound call.
    flops = 2 * B_pad * (E * H + H * OUT_pad)
    bytes_accessed = (
        z.size * z.dtype.itemsize
        + w3.size * w3.dtype.itemsize
        + b3.size * b3.dtype.itemsize
        + w4.size * w4.dtype.itemsize
        + b4.size * b4.dtype.itemsize
        + B_pad * OUT_pad * 4
    )
    cost = pl.CostEstimate(
        flops=flops,
        transcendentals=B_pad * OUT_pad,           # sigmoid (exp) per output element
        bytes_accessed=bytes_accessed,
    )

    out = pl.pallas_call(
        _decoder_kernel,
        out_shape=jax.ShapeDtypeStruct((B_pad, OUT_pad), jnp.float32),
        grid_spec=pl.GridSpec(
            grid=grid,
            in_specs=[
                pl.BlockSpec((TM, E), lambda i: (i, 0)),        # z tile follows grid
                pl.BlockSpec((E, H), lambda i: (0, 0)),         # weights resident
                pl.BlockSpec((1, H), lambda i: (0, 0)),
                pl.BlockSpec((H, OUT_pad), lambda i: (0, 0)),
                pl.BlockSpec((1, OUT_pad), lambda i: (0, 0)),
            ],
            out_specs=pl.BlockSpec((TM, OUT_pad), lambda i: (i, 0)),
        ),
        compiler_params=pltpu.CompilerParams(
            dimension_semantics=("parallel",),                  # megacore-shardable batch axis
            vmem_limit_bytes=48 * 1024 * 1024,                  # safe under v7x's 64 MiB VMEM
        ),
        cost_estimate=cost,
    )(z, w3, b3, w4, b4)

    return out[:B, :OUT]


def init_params(key, embedding_size):
    """Deterministic init matching nn.Linear shapes (stored as [in, out]).
    Weights in bf16 (HBM-bandwidth lever), biases in f32."""
    k1, k2, k3, k4 = jax.random.split(key, 4)
    H, OUT = 1024, 784
    lim3 = 1.0 / jnp.sqrt(jnp.float32(embedding_size))
    lim4 = 1.0 / jnp.sqrt(jnp.float32(H))
    w3 = jax.random.uniform(k1, (embedding_size, H), jnp.float32, -lim3, lim3).astype(jnp.bfloat16)
    b3 = jax.random.uniform(k2, (1, H), jnp.float32, -lim3, lim3)
    w4 = jax.random.uniform(k3, (H, OUT), jnp.float32, -lim4, lim4).astype(jnp.bfloat16)
    b4 = jax.random.uniform(k4, (1, OUT), jnp.float32, -lim4, lim4)
    return w3, b3, w4, b4


if __name__ == "__main__":
    key = jax.random.PRNGKey(0)
    k_in, k_par = jax.random.split(key)

    batch = 8
    embedding_size = 32

    z = jax.random.normal(k_in, (batch, embedding_size), jnp.float32)
    w3, b3, w4, b4 = init_params(k_par, embedding_size)

    out = fc_decoder_forward(z, w3, b3, w4, b4)
    out = jax.block_until_ready(out)
    assert out.shape == (batch, 784)

    # Reference 1: plain-JAX forward mirroring the kernel's bf16 weight path (tight tol).
    h_ref = jnp.dot(z.astype(jnp.bfloat16), w3, preferred_element_type=jnp.float32) + b3
    h_ref = jnp.maximum(h_ref, 0.0).astype(jnp.bfloat16)
    ref_bf16 = jax.nn.sigmoid(jnp.dot(h_ref, w4, preferred_element_type=jnp.float32) + b4)
    assert jnp.allclose(out, ref_bf16, atol=2e-3, rtol=2e-3)

    # Reference 2: full-f32 forward (looser tol; weights are quantized to bf16).
    ref_f32 = jax.nn.sigmoid(
        jnp.maximum(z @ w3.astype(jnp.float32) + b3, 0.0) @ w4.astype(jnp.float32) + b4
    )
    assert jnp.allclose(out, ref_f32, atol=3e-2, rtol=3e-2)

    print("KERNEL_OK")
</pallas_src>

<mosaic_0001>
module attributes {stable_mosaic.version = 11 : i64} {
  func.func @_decoder_kernel(%arg0: i32, %arg1: memref<8x32xf32, #tpu.memory_space<vmem>>, %arg2: memref<32x1024xbf16, #tpu.memory_space<vmem>>, %arg3: memref<1x1024xf32, #tpu.memory_space<vmem>>, %arg4: memref<1024x896xbf16, #tpu.memory_space<vmem>>, %arg5: memref<1x896xf32, #tpu.memory_space<vmem>>, %arg6: memref<8x896xf32, #tpu.memory_space<vmem>>) attributes {dimension_semantics = [#tpu.dimension_semantics<parallel>], iteration_bounds = array<i64: 1>, scalar_prefetch = 0 : i64, scratch_operands = 0 : i64, tpu.core_type = #tpu.core_type<tc>, window_params = [{transform_indices = @transform_0, window_bounds = array<i64: 8, 32>}, {pipeline_mode = #tpu.pipeline_mode<synchronous>, transform_indices = @transform_1, window_bounds = array<i64: 32, 1024>}, {pipeline_mode = #tpu.pipeline_mode<synchronous>, transform_indices = @transform_2, window_bounds = array<i64: 1, 1024>}, {pipeline_mode = #tpu.pipeline_mode<synchronous>, transform_indices = @transform_3, window_bounds = array<i64: 1024, 896>}, {pipeline_mode = #tpu.pipeline_mode<synchronous>, transform_indices = @transform_4, window_bounds = array<i64: 1, 896>}, {transform_indices = @transform_5, window_bounds = array<i64: 8, 896>}]} {
    %c0 = arith.constant 0 : index
    %c0_0 = arith.constant 0 : index
    %0 = vector.load %arg1[%c0, %c0_0] : memref<8x32xf32, #tpu.memory_space<vmem>>, vector<8x32xf32>
    %1 = arith.truncf %0 : vector<8x32xf32> to vector<8x32xbf16>
    %c0_1 = arith.constant 0 : index
    %c0_2 = arith.constant 0 : index
    %2 = vector.load %arg2[%c0_1, %c0_2] : memref<32x1024xbf16, #tpu.memory_space<vmem>>, vector<32x1024xbf16>
    %cst = arith.constant dense<0.000000e+00> : vector<8x1024xf32>
    %3 = tpu.matmul %1, %2, %cst {dimension_numbers = #tpu.dot_dimension_numbers<[1], [0], [0], [1], [0, 0, 1, 1], [], []>} : vector<8x32xbf16>, vector<32x1024xbf16>, vector<8x1024xf32> -> vector<8x1024xf32>
    %c0_3 = arith.constant 0 : index
    %c0_4 = arith.constant 0 : index
    %4 = vector.load %arg3[%c0_3, %c0_4] : memref<1x1024xf32, #tpu.memory_space<vmem>>, vector<1x1024xf32>
    %5 = vector.broadcast %4 : vector<1x1024xf32> to vector<8x1024xf32>
    %6 = arith.addf %3, %5 : vector<8x1024xf32>
    %cst_5 = arith.constant 0.000000e+00 : f32
    %7 = vector.broadcast %cst_5 : f32 to vector<8x1024xf32>
    %8 = arith.maximumf %6, %7 : vector<8x1024xf32>
    %9 = arith.truncf %8 : vector<8x1024xf32> to vector<8x1024xbf16>
    %c0_6 = arith.constant 0 : index
    %c0_7 = arith.constant 0 : index
    %10 = vector.load %arg4[%c0_6, %c0_7] : memref<1024x896xbf16, #tpu.memory_space<vmem>>, vector<1024x896xbf16>
    %cst_8 = arith.constant dense<0.000000e+00> : vector<8x896xf32>
    %11 = tpu.matmul %9, %10, %cst_8 {dimension_numbers = #tpu.dot_dimension_numbers<[1], [0], [0], [1], [0, 0, 1, 1], [], []>} : vector<8x1024xbf16>, vector<1024x896xbf16>, vector<8x896xf32> -> vector<8x896xf32>
    %c0_9 = arith.constant 0 : index
    %c0_10 = arith.constant 0 : index
    %12 = vector.load %arg5[%c0_9, %c0_10] : memref<1x896xf32, #tpu.memory_space<vmem>>, vector<1x896xf32>
    %13 = vector.broadcast %12 : vector<1x896xf32> to vector<8x896xf32>
    %14 = arith.addf %11, %13 : vector<8x896xf32>
    %15 = arith.negf %14 : vector<8x896xf32>
    %16 = math.exp %15 : vector<8x896xf32>
    %cst_11 = arith.constant 1.000000e+00 : f32
    %17 = vector.broadcast %cst_11 : f32 to vector<8x896xf32>
    %18 = arith.addf %17, %16 : vector<8x896xf32>
    %19 = arith.divf %17, %18 : vector<8x896xf32>
    %c0_12 = arith.constant 0 : index
    %c0_13 = arith.constant 0 : index
    %20 = vector.load %arg6[%c0_12, %c0_13] : memref<8x896xf32, #tpu.memory_space<vmem>>, vector<8x896xf32>
    tpu.vector_store %arg6[%c0_12, %c0_13], %19 {strides = array<i32>} : memref<8x896xf32, #tpu.memory_space<vmem>>, vector<8x896xf32>,
    return
  }
  func.func @transform_0(%arg0: i32) -> (i32, i32) {
    %c0_i32 = arith.constant 0 : i32
    %c0_i32_0 = arith.constant 0 : i32
    return %arg0, %c0_i32 : i32, i32
  }
  func.func @transform_1(%arg0: i32) -> (i32, i32) {
    %c0_i32 = arith.constant 0 : i32
    %c0_i32_0 = arith.constant 0 : i32
    %c0_i32_1 = arith.constant 0 : i32
    return %c0_i32, %c0_i32_0 : i32, i32
  }
  func.func @transform_2(%arg0: i32) -> (i32, i32) {
    %c0_i32 = arith.constant 0 : i32
    %c0_i32_0 = arith.constant 0 : i32
    %c0_i32_1 = arith.constant 0 : i32
    return %c0_i32, %c0_i32_0 : i32, i32
  }
  func.func @transform_3(%arg0: i32) -> (i32, i32) {
    %c0_i32 = arith.constant 0 : i32
    %c0_i32_0 = arith.constant 0 : i32
    %c0_i32_1 = arith.constant 0 : i32
    return %c0_i32, %c0_i32_0 : i32, i32
  }
  func.func @transform_4(%arg0: i32) -> (i32, i32) {
    %c0_i32 = arith.constant 0 : i32
    %c0_i32_0 = arith.constant 0 : i32
    %c0_i32_1 = arith.constant 0 : i32
    return %c0_i32, %c0_i32_0 : i32, i32
  }
  func.func @transform_5(%arg0: i32) -> (i32, i32) {
    %c0_i32 = arith.constant 0 : i32
    %c0_i32_0 = arith.constant 0 : i32
    return %arg0, %c0_i32 : i32, i32
  }
}

</mosaic_0001>

<llo_original>
// kernel: fc_decoder_forward.1
$region0: #{fc_decoder_forward.1}
  #allocation0 [shape = 'u32[]', space=smem, size = 0x4, offset = 0x4, fixed_abs, tag = 'smem constant byte address 0x4 - core index']
  #allocation1 [shape = 'u32[144,128]{1,0:T(1,128)}', space=vmem, size = 0x12000, scoped, tag = 'internal scratch']
  %s0 = inlined_call_operand.vmem [shape: f32[8,32], index: 0, kind: input, shape index: {}]
  %s1 = inlined_call_operand.vmem [shape: bf16[32,1024], index: 1, kind: input, shape index: {}]
  %s2 = inlined_call_operand.vmem [shape: f32[1,1024], index: 2, kind: input, shape index: {}]
  %s3 = inlined_call_operand.vmem [shape: bf16[1024,896], index: 3, kind: input, shape index: {}]
  %s4 = inlined_call_operand.vmem [shape: f32[1,896], index: 4, kind: input, shape index: {}]
  %s5 = inlined_call_operand.hbm [shape: f32[8,896], index: 5, kind: output, shape index: {}]
  %s6 = sld [smem:[#allocation0]]
  $region30: #{fc_decoder_forward.1} parent=0
    _
  %s8 = ssub.s32 1, %s6
  %s9 = scalar_select 0, %s8, %s6
  $region1: #{fc_decoder_forward.1} parent=0
    #allocation2 [shape = 'u8[28672]{0}', space=vmem, size = 0x7000, scoped, tag = 'output window, operand 0, single buffered']
    #allocation3 [shape = 's32[1]{0}', space=sflag, size = 0x4, scoped, tag = 'scoped memory for fc_decoder_forward.1']
    %10 = vsyncpa [#allocation3], 0
    // Predicated region
    $region2: #{fc_decoder_forward.1} parent=1 // pred_check
      _
    $region3: #{fc_decoder_forward.1} parent=1 // pred_check_branch
      %12 = sbr.rel (0) target = $region5
    $region4: #{fc_decoder_forward.1} parent=1 // pred_region
      _
    $region5: #{fc_decoder_forward.1} parent=1 // pred_fallthru
      _
    // Predicated region
    $region6: #{fc_decoder_forward.1} parent=1 // pred_check
      _
    $region7: #{fc_decoder_forward.1} parent=1 // pred_check_branch
      %14 = sbr.rel (0) target = $region9
    $region8: #{fc_decoder_forward.1} parent=1 // pred_region
      _
    $region9: #{fc_decoder_forward.1} parent=1 // pred_fallthru
      _
    // Predicated region
    $region10: #{fc_decoder_forward.1} parent=1 // pred_check
      _
    $region11: #{fc_decoder_forward.1} parent=1 // pred_check_branch
      %16 = sbr.rel (0) target = $region13
    $region12: #{fc_decoder_forward.1} parent=1 // pred_region
      _
    $region13: #{fc_decoder_forward.1} parent=1 // pred_fallthru
      _
    // Predicated region
    $region14: #{fc_decoder_forward.1} parent=1 // pred_check
      _
    $region15: #{fc_decoder_forward.1} parent=1 // pred_check_branch
      %18 = sbr.rel (0) target = $region17
    $region16: #{fc_decoder_forward.1} parent=1 // pred_region
      _
    $region17: #{fc_decoder_forward.1} parent=1 // pred_fallthru
      _
    // Predicated region
    $region18: #{fc_decoder_forward.1} parent=1 // pred_check
      _
    $region19: #{fc_decoder_forward.1} parent=1 // pred_check_branch
      %20 = sbr.rel (0) target = $region21
    $region20: #{fc_decoder_forward.1} parent=1 // pred_region
      _
    $region21: #{fc_decoder_forward.1} parent=1 // pred_fallthru
      _
    %v22 = vld [vmem:[%s0] sm:$0xff]
    %v23 = vpack.c.bf16 %v22, %v22
    %v24 = vld [vmem:[%s1] sm:$0xff]
    %v25 = vld [vmem:[%s1 + $0x8] sm:$0xff]
    %v26 = vld [vmem:[%s1 + $0x10] sm:$0xff]
    %v27 = vld [vmem:[%s1 + $0x18] sm:$0xff]
    %v28 = vld [vmem:[%s1 + $0x20] sm:$0xff]
    %v29 = vld [vmem:[%s1 + $0x28] sm:$0xff]
    %v30 = vld [vmem:[%s1 + $0x30] sm:$0xff]
    %v31 = vld [vmem:[%s1 + $0x38] sm:$0xff]
    %v32 = vld [vmem:[%s1 + $0x40] sm:$0xff]
    %v33 = vld [vmem:[%s1 + $0x48] sm:$0xff]
    %v34 = vld [vmem:[%s1 + $0x50] sm:$0xff]
    %v35 = vld [vmem:[%s1 + $0x58] sm:$0xff]
    %v36 = vld [vmem:[%s1 + $0x60] sm:$0xff]
    %v37 = vld [vmem:[%s1 + $0x68] sm:$0xff]
    %v38 = vld [vmem:[%s1 + $0x70] sm:$0xff]
    %v39 = vld [vmem:[%s1 + $0x78] sm:$0xff]
    %v40 = vld [vmem:[%s2] sm:$0xff]
    %v42 = vlaneseq
    %v43 = vshrl.u32 %v42, 7
    %v44 = vsub.s32 0, %v43
    %v45 = vrot.slane %v40, %v44
    %v46 = vlaneseq
    %v47 = vshrl.u32 %v46, 7
    %v48 = vsub.s32 1, %v47
    %v49 = vrot.slane %v40, %v48
    %v50 = vlaneseq
    %v51 = vshrl.u32 %v50, 7
    %v52 = vsub.s32 2, %v51
    %v53 = vrot.slane %v40, %v52
    %v54 = vlaneseq
    %v55 = vshrl.u32 %v54, 7
    %v56 = vsub.s32 3, %v55
    %v57 = vrot.slane %v40, %v56
    %v58 = vlaneseq
    %v59 = vshrl.u32 %v58, 7
    %v60 = vsub.s32 4, %v59
    %v61 = vrot.slane %v40, %v60
    %v62 = vlaneseq
    %v63 = vshrl.u32 %v62, 7
    %v64 = vsub.s32 5, %v63
    %v65 = vrot.slane %v40, %v64
    %v66 = vlaneseq
    %v67 = vshrl.u32 %v66, 7
    %v68 = vsub.s32 6, %v67
    %v69 = vrot.slane %v40, %v68
    %v70 = vlaneseq
    %v71 = vshrl.u32 %v70, 7
    %v72 = vsub.s32 7, %v71
    %v73 = vrot.slane %v40, %v72
    %v98 = vunpack.c.l.b16 %v24
    %v99 = vunpack.c.h.b16 %v24
    %v100 = vunpack.c.l.b16 %v25
    %v101 = vunpack.c.h.b16 %v25
    %v102 = vunpack.c.l.b16 %v26
    %v103 = vunpack.c.h.b16 %v26
    %v104 = vunpack.c.l.b16 %v27
    %v105 = vunpack.c.h.b16 %v27
    %v106 = vunpack.c.l.b16 %v28
    %v107 = vunpack.c.h.b16 %v28
    %v108 = vunpack.c.l.b16 %v29
    %v109 = vunpack.c.h.b16 %v29
    %v110 = vunpack.c.l.b16 %v30
    %v111 = vunpack.c.h.b16 %v30
    %v112 = vunpack.c.l.b16 %v31
    %v113 = vunpack.c.h.b16 %v31
    %v114 = vunpack.c.l.b16 %v32
    %v115 = vunpack.c.h.b16 %v32
    %v116 = vunpack.c.l.b16 %v33
    %v117 = vunpack.c.h.b16 %v33
    %v118 = vunpack.c.l.b16 %v34
    %v119 = vunpack.c.h.b16 %v34
    %v120 = vunpack.c.l.b16 %v35
    %v121 = vunpack.c.h.b16 %v35
    %v122 = vunpack.c.l.b16 %v36
    %v123 = vunpack.c.h.b16 %v36
    %v124 = vunpack.c.l.b16 %v37
    %v125 = vunpack.c.h.b16 %v37
    %v126 = vunpack.c.l.b16 %v38
    %v127 = vunpack.c.h.b16 %v38
    %v128 = vunpack.c.l.b16 %v39
    %v129 = vunpack.c.h.b16 %v39
    %v130 = vpack.c.b16 %v106, %v98
    %v131 = vpack.c.b16 %v107, %v99
    %v132 = vpack.c.b16 %v108, %v100
    %v133 = vpack.c.b16 %v109, %v101
    %v134 = vpack.c.b16 %v110, %v102
    %v135 = vpack.c.b16 %v111, %v103
    %v136 = vpack.c.b16 %v112, %v104
    %v137 = vpack.c.b16 %v113, %v105
    %v138 = vpack.c.b16 %v122, %v114
    %v139 = vpack.c.b16 %v123, %v115
    %v140 = vpack.c.b16 %v124, %v116
    %v141 = vpack.c.b16 %v125, %v117
    %v142 = vpack.c.b16 %v126, %v118
    %v143 = vpack.c.b16 %v127, %v119
    %v144 = vpack.c.b16 %v128, %v120
    %v145 = vpack.c.b16 %v129, %v121
    %vm162 = vcmask 261120
    %v164 = vsel %vm162, %v23, 0
    %166 = vmatprep.subr.bf16.mxu0 0
    %167 = vmatpush1.bf16.msra.mxu0 0
    %168 = vmatprep.subr.bf16.mxu0 0
    %169 = vmatpush1.bf16.msra.mxu0 0
    %170 = vmatprep.subr.bf16.mxu0 0
    %171 = vmatpush1.bf16.msra.mxu0 0
    %172 = vmatprep.subr.bf16.mxu0 0
    %173 = vmatpush1.bf16.msra.mxu0 0
    %174 = vmatprep.subr.bf16.mxu0 0
    %175 = vmatpush1.bf16.msra.mxu0 0
    %176 = vmatprep.subr.bf16.mxu0 0
    %177 = vmatpush1.bf16.msra.mxu0 0
    %178 = vmatprep.subr.bf16.mxu0 %v139
    %179 = vmatpush1.bf16.msra.mxu0 %v138
    %180 = vmatprep.subr.bf16.mxu0 %v131
    %181 = vmatpush1.bf16.msra.mxu0 %v130
    %182 = vmatprep.subr.bf16.mxu0 0
    %183 = vmatpush2.bf16.msra.mxu0 0
    %184 = vmatprep.subr.bf16.mxu0 0
    %185 = vmatpush2.bf16.msra.mxu0 0
    %186 = vmatprep.subr.bf16.mxu0 0
    %187 = vmatpush2.bf16.msra.mxu0 0
    %188 = vmatprep.subr.bf16.mxu0 0
    %189 = vmatpush2.bf16.msra.mxu0 0
    %190 = vmatprep.subr.bf16.mxu0 0
    %191 = vmatpush2.bf16.msra.mxu0 0
    %192 = vmatprep.subr.bf16.mxu0 0
    %193 = vmatpush2.bf16.msra.mxu0 0
    %194 = vmatprep.subr.bf16.mxu0 0
    %195 = vmatpush2.bf16.msra.mxu0 0
    %196 = vmatprep.subr.bf16.mxu0 0
    %197 = vmatpush2.bf16.msra.mxu0 0
    %198 = vmatprep.mubr.bf16.mxu0 0
    %199 = vmatmul.mubr.bf16.gmra.mxu0 %v164
    %v200 = vpop.f32.mrf.mxu0
    %v201 = vadd.f32 %v45, %v200
    %v202 = vpop.f32.mrf.mxu0
    %v203 = vadd.f32 %v49, %v202
    %v204 = vpop.f32.mrf.mxu0
    %v205 = vpop.f32.mrf.mxu0
    %206 = vdwg.mxu0
    %207 = vmatprep.subr.bf16.mxu0 0
    %208 = vmatpush1.bf16.msra.mxu0 0
    %209 = vmatprep.subr.bf16.mxu0 0
    %210 = vmatpush1.bf16.msra.mxu0 0
    %211 = vmatprep.subr.bf16.mxu0 0
    %212 = vmatpush1.bf16.msra.mxu0 0
    %213 = vmatprep.subr.bf16.mxu0 0
    %214 = vmatpush1.bf16.msra.mxu0 0
    %215 = vmatprep.subr.bf16.mxu0 0
    %216 = vmatpush1.bf16.msra.mxu0 0
    %217 = vmatprep.subr.bf16.mxu0 0
    %218 = vmatpush1.bf16.msra.mxu0 0
    %219 = vmatprep.subr.bf16.mxu0 %v141
    %220 = vmatpush1.bf16.msra.mxu0 %v140
    %221 = vmatprep.subr.bf16.mxu0 %v133
    %222 = vmatpush1.bf16.msra.mxu0 %v132
    %223 = vmatprep.subr.bf16.mxu0 0
    %224 = vmatpush2.bf16.msra.mxu0 0
    %225 = vmatprep.subr.bf16.mxu0 0
    %226 = vmatpush2.bf16.msra.mxu0 0
    %227 = vmatprep.subr.bf16.mxu0 0
    %228 = vmatpush2.bf16.msra.mxu0 0
    %229 = vmatprep.subr.bf16.mxu0 0
    %230 = vmatpush2.bf16.msra.mxu0 0
    %231 = vmatprep.subr.bf16.mxu0 0
    %232 = vmatpush2.bf16.msra.mxu0 0
    %233 = vmatprep.subr.bf16.mxu0 0
    %234 = vmatpush2.bf16.msra.mxu0 0
    %235 = vmatprep.subr.bf16.mxu0 0
    %236 = vmatpush2.bf16.msra.mxu0 0
    %237 = vmatprep.subr.bf16.mxu0 0
    %238 = vmatpush2.bf16.msra.mxu0 0
    %239 = vmatprep.mubr.bf16.mxu0 0
    %240 = vmatmul.mubr.bf16.gmra.mxu0 %v164
    %v241 = vpop.f32.mrf.mxu0
    %v242 = vadd.f32 %v53, %v241
    %v243 = vpop.f32.mrf.mxu0
    %v244 = vadd.f32 %v57, %v243
    %v245 = vpop.f32.mrf.mxu0
    %v246 = vpop.f32.mrf.mxu0
    %247 = vdwg.mxu0
    %248 = vmatprep.subr.bf16.mxu0 0
    %249 = vmatpush1.bf16.msra.mxu0 0
    %250 = vmatprep.subr.bf16.mxu0 0
    %251 = vmatpush1.bf16.msra.mxu0 0
    %252 = vmatprep.subr.bf16.mxu0 0
    %253 = vmatpush1.bf16.msra.mxu0 0
    %254 = vmatprep.subr.bf16.mxu0 0
    %255 = vmatpush1.bf16.msra.mxu0 0
    %256 = vmatprep.subr.bf16.mxu0 0
    %257 = vmatpush1.bf16.msra.mxu0 0
    %258 = vmatprep.subr.bf16.mxu0 0
    %259 = vmatpush1.bf16.msra.mxu0 0
    %260 = vmatprep.subr.bf16.mxu0 %v143
    %261 = vmatpush1.bf16.msra.mxu0 %v142
    %262 = vmatprep.subr.bf16.mxu0 %v135
    %263 = vmatpush1.bf16.msra.mxu0 %v134
    %264 = vmatprep.subr.bf16.mxu0 0
    %265 = vmatpush2.bf16.msra.mxu0 0
    %266 = vmatprep.subr.bf16.mxu0 0
    %267 = vmatpush2.bf16.msra.mxu0 0
    %268 = vmatprep.subr.bf16.mxu0 0
    %269 = vmatpush2.bf16.msra.mxu0 0
    %270 = vmatprep.subr.bf16.mxu0 0
    %271 = vmatpush2.bf16.msra.mxu0 0
    %272 = vmatprep.subr.bf16.mxu0 0
    %273 = vmatpush2.bf16.msra.mxu0 0
    %274 = vmatprep.subr.bf16.mxu0 0
    %275 = vmatpush2.bf16.msra.mxu0 0
    %276 = vmatprep.subr.bf16.mxu0 0
    %277 = vmatpush2.bf16.msra.mxu0 0
    %278 = vmatprep.subr.bf16.mxu0 0
    %279 = vmatpush2.bf16.msra.mxu0 0
    %280 = vmatprep.mubr.bf16.mxu0 0
    %281 = vmatmul.mubr.bf16.gmra.mxu0 %v164
    %v282 = vpop.f32.mrf.mxu0
    %v283 = vadd.f32 %v61, %v282
    %v284 = vpop.f32.mrf.mxu0
    %v285 = vadd.f32 %v65, %v284
    %v286 = vpop.f32.mrf.mxu0
    %v287 = vpop.f32.mrf.mxu0
    %288 = vdwg.mxu0
    %289 = vmatprep.subr.bf16.mxu0 0
    %290 = vmatpush1.bf16.msra.mxu0 0
    %291 = vmatprep.subr.bf16.mxu0 0
    %292 = vmatpush1.bf16.msra.mxu0 0
    %293 = vmatprep.subr.bf16.mxu0 0
    %294 = vmatpush1.bf16.msra.mxu0 0
    %295 = vmatprep.subr.bf16.mxu0 0
    %296 = vmatpush1.bf16.msra.mxu0 0
    %297 = vmatprep.subr.bf16.mxu0 0
    %298 = vmatpush1.bf16.msra.mxu0 0
    %299 = vmatprep.subr.bf16.mxu0 0
    %300 = vmatpush1.bf16.msra.mxu0 0
    %301 = vmatprep.subr.bf16.mxu0 %v145
    %302 = vmatpush1.bf16.msra.mxu0 %v144
    %303 = vmatprep.subr.bf16.mxu0 %v137
    %304 = vmatpush1.bf16.msra.mxu0 %v136
    %305 = vmatprep.subr.bf16.mxu0 0
    %306 = vmatpush2.bf16.msra.mxu0 0
    %307 = vmatprep.subr.bf16.mxu0 0
    %308 = vmatpush2.bf16.msra.mxu0 0
    %309 = vmatprep.subr.bf16.mxu0 0
    %310 = vmatpush2.bf16.msra.mxu0 0
    %311 = vmatprep.subr.bf16.mxu0 0
    %312 = vmatpush2.bf16.msra.mxu0 0
    %313 = vmatprep.subr.bf16.mxu0 0
    %314 = vmatpush2.bf16.msra.mxu0 0
    %315 = vmatprep.subr.bf16.mxu0 0
    %316 = vmatpush2.bf16.msra.mxu0 0
    %317 = vmatprep.subr.bf16.mxu0 0
    %318 = vmatpush2.bf16.msra.mxu0 0
    %319 = vmatprep.subr.bf16.mxu0 0
    %320 = vmatpush2.bf16.msra.mxu0 0
    %321 = vmatprep.mubr.bf16.mxu0 0
    %322 = vmatmul.mubr.bf16.gmra.mxu0 %v164
    %v323 = vpop.f32.mrf.mxu0
    %v324 = vadd.f32 %v69, %v323
    %v325 = vpop.f32.mrf.mxu0
    %v326 = vadd.f32 %v73, %v325
    %v327 = vpop.f32.mrf.mxu0
    %v328 = vpop.f32.mrf.mxu0
    %329 = vdwg.mxu0
    %v330 = vmax.f32 %v201, 0.0
    %v331 = vmax.f32 %v203, 0.0
    %v332 = vmax.f32 %v242, 0.0
    %v333 = vmax.f32 %v244, 0.0
    %v334 = vmax.f32 %v283, 0.0
    %v335 = vmax.f32 %v285, 0.0
    %v336 = vmax.f32 %v324, 0.0
    %v337 = vmax.f32 %v326, 0.0
    %v338 = vpack.c.bf16 %v330, %v330
    %v339 = vpack.c.bf16 %v331, %v331
    %v340 = vpack.c.bf16 %v332, %v332
    %v341 = vpack.c.bf16 %v333, %v333
    %v342 = vpack.c.bf16 %v334, %v334
    %v343 = vpack.c.bf16 %v335, %v335
    %v344 = vpack.c.bf16 %v336, %v336
    %v345 = vpack.c.bf16 %v337, %v337
    %v346 = vld [vmem:[%s3] sm:$0xff]
    %v347 = vld [vmem:[%s3 + $0x8] sm:$0xff]
    %v348 = vld [vmem:[%s3 + $0x10] sm:$0xff]
    %v349 = vld [vmem:[%s3 + $0x18] sm:$0xf]
    %v350 = vld [vmem:[%s3 + $0x1c] sm:$0xff]
    %v351 = vld [vmem:[%s3 + $0x24] sm:$0xff]
    %v352 = vld [vmem:[%s3 + $0x2c] sm:$0xff]
    %v353 = vld [vmem:[%s3 + $0x34] sm:$0xf]
    %v354 = vld [vmem:[%s3 + $0x38] sm:$0xff]
    %v355 = vld [vmem:[%s3 + $0x40] sm:$0xff]
    %v356 = vld [vmem:[%s3 + $0x48] sm:$0xff]
    %v357 = vld [vmem:[%s3 + $0x50] sm:$0xf]
    %v358 = vld [vmem:[%s3 + $0x54] sm:$0xff]
    %v359 = vld [vmem:[%s3 + $0x5c] sm:$0xff]
    %v360 = vld [vmem:[%s3 + $0x64] sm:$0xff]
    %v361 = vld [vmem:[%s3 + $0x6c] sm:$0xf]
    %v362 = vld [vmem:[%s3 + $0x70] sm:$0xff]
    %v363 = vld [vmem:[%s3 + $0x78] sm:$0xff]
    %v364 = vld [vmem:[%s3 + $0x80] sm:$0xff]
    %v365 = vld [vmem:[%s3 + $0x88] sm:$0xf]
    %v366 = vld [vmem:[%s3 + $0x8c] sm:$0xff]
    %v367 = vld [vmem:[%s3 + $0x94] sm:$0xff]
    %v368 = vld [vmem:[%s3 + $0x9c] sm:$0xff]
    %v369 = vld [vmem:[%s3 + $0xa4] sm:$0xf]
    %v370 = vld [vmem:[%s3 + $0xa8] sm:$0xff]
    %v371 = vld [vmem:[%s3 + $0xb0] sm:$0xff]
    %v372 = vld [vmem:[%s3 + $0xb8] sm:$0xff]
    %v373 = vld [vmem:[%s3 + $0xc0] sm:$0xf]
    %v374 = vld [vmem:[%s3 + $0xc4] sm:$0xff]
    %v375 = vld [vmem:[%s3 + $0xcc] sm:$0xff]
    %v376 = vld [vmem:[%s3 + $0xd4] sm:$0xff]
    %v377 = vld [vmem:[%s3 + $0xdc] sm:$0xf]
    %v378 = vld [vmem:[%s3 + $0xe0] sm:$0xff]
    %v379 = vld [vmem:[%s3 + $0xe8] sm:$0xff]
    %v380 = vld [vmem:[%s3 + $0xf0] sm:$0xff]
    %v381 = vld [vmem:[%s3 + $0xf8] sm:$0xf]
    %v382 = vld [vmem:[%s3 + $0xfc] sm:$0xff]
    %v383 = vld [vmem:[%s3 + $0x104] sm:$0xff]
    %v384 = vld [vmem:[%s3 + $0x10c] sm:$0xff]
    %v385 = vld [vmem:[%s3 + $0x114] sm:$0xf]
    %v386 = vld [vmem:[%s3 + $0x118] sm:$0xff]
    %v387 = vld [vmem:[%s3 + $0x120] sm:$0xff]
    %v388 = vld [vmem:[%s3 + $0x128] sm:$0xff]
    %v389 = vld [vmem:[%s3 + $0x130] sm:$0xf]
    %v390 = vld [vmem:[%s3 + $0x134] sm:$0xff]
    %v391 = vld [vmem:[%s3 + $0x13c] sm:$0xff]
    %v392 = vld [vmem:[%s3 + $0x144] sm:$0xff]
    %v393 = vld [vmem:[%s3 + $0x14c] sm:$0xf]
    %v394 = vld [vmem:[%s3 + $0x150] sm:$0xff]
    %v395 = vld [vmem:[%s3 + $0x158] sm:$0xff]
    %v396 = vld [vmem:[%s3 + $0x160] sm:$0xff]
    %v397 = vld [vmem:[%s3 + $0x168] sm:$0xf]
    %v398 = vld [vmem:[%s3 + $0x16c] sm:$0xff]
    %v399 = vld [vmem:[%s3 + $0x174] sm:$0xff]
    %v400 = vld [vmem:[%s3 + $0x17c] sm:$0xff]
    %v401 = vld [vmem:[%s3 + $0x184] sm:$0xf]
    %v402 = vld [vmem:[%s3 + $0x188] sm:$0xff]
    %v403 = vld [vmem:[%s3 + $0x190] sm:$0xff]
    %v404 = vld [vmem:[%s3 + $0x198] sm:$0xff]
    %v405 = vld [vmem:[%s3 + $0x1a0] sm:$0xf]
    %v406 = vld [vmem:[%s3 + $0x1a4] sm:$0xff]
    %v407 = vld [vmem:[%s3 + $0x1ac] sm:$0xff]
    %v408 = vld [vmem:[%s3 + $0x1b4] sm:$0xff]
    %v409 = vld [vmem:[%s3 + $0x1bc] sm:$0xf]
    %v410 = vld [vmem:[%s3 + $0x1c0] sm:$0xff]
    %v411 = vld [vmem:[%s3 + $0x1c8] sm:$0xff]
    %v412 = vld [vmem:[%s3 + $0x1d0] sm:$0xff]
    %v413 = vld [vmem:[%s3 + $0x1d8] sm:$0xf]
    %v414 = vld [vmem:[%s3 + $0x1dc] sm:$0xff]
    %v415 = vld [vmem:[%s3 + $0x1e4] sm:$0xff]
    %v416 = vld [vmem:[%s3 + $0x1ec] sm:$0xff]
    %v417 = vld [vmem:[%s3 + $0x1f4] sm:$0xf]
    %v418 = vld [vmem:[%s3 + $0x1f8] sm:$0xff]
    %v419 = vld [vmem:[%s3 + $0x200] sm:$0xff]
    %v420 = vld [vmem:[%s3 + $0x208] sm:$0xff]
    %v421 = vld [vmem:[%s3 + $0x210] sm:$0xf]
    %v422 = vld [vmem:[%s3 + $0x214] sm:$0xff]
    %v423 = vld [vmem:[%s3 + $0x21c] sm:$0xff]
    %v424 = vld [vmem:[%s3 + $0x224] sm:$0xff]
    %v425 = vld [vmem:[%s3 + $0x22c] sm:$0xf]
    %v426 = vld [vmem:[%s3 + $0x230] sm:$0xff]
    %v427 = vld [vmem:[%s3 + $0x238] sm:$0xff]
    %v428 = vld [vmem:[%s3 + $0x240] sm:$0xff]
    %v429 = vld [vmem:[%s3 + $0x248] sm:$0xf]
    %v430 = vld [vmem:[%s3 + $0x24c] sm:$0xff]
    %v431 = vld [vmem:[%s3 + $0x254] sm:$0xff]
    %v432 = vld [vmem:[%s3 + $0x25c] sm:$0xff]
    %v433 = vld [vmem:[%s3 + $0x264] sm:$0xf]
    %v434 = vld [vmem:[%s3 + $0x268] sm:$0xff]
    %v435 = vld [vmem:[%s3 + $0x270] sm:$0xff]
    %v436 = vld [vmem:[%s3 + $0x278] sm:$0xff]
    %v437 = vld [vmem:[%s3 + $0x280] sm:$0xf]
    %v438 = vld [vmem:[%s3 + $0x284] sm:$0xff]
    %v439 = vld [vmem:[%s3 + $0x28c] sm:$0xff]
    %v440 = vld [vmem:[%s3 + $0x294] sm:$0xff]
    %v441 = vld [vmem:[%s3 + $0x29c] sm:$0xf]
    %v442 = vld [vmem:[%s3 + $0x2a0] sm:$0xff]
    %v443 = vld [vmem:[%s3 + $0x2a8] sm:$0xff]
    %v444 = vld [vmem:[%s3 + $0x2b0] sm:$0xff]
    %v445 = vld [vmem:[%s3 + $0x2b8] sm:$0xf]
    %v446 = vld [vmem:[%s3 + $0x2bc] sm:$0xff]
    %v447 = vld [vmem:[%s3 + $0x2c4] sm:$0xff]
    %v448 = vld [vmem:[%s3 + $0x2cc] sm:$0xff]
    %v449 = vld [vmem:[%s3 + $0x2d4] sm:$0xf]
    %v450 = vld [vmem:[%s3 + $0x2d8] sm:$0xff]
    %v451 = vld [vmem:[%s3 + $0x2e0] sm:$0xff]
    %v452 = vld [vmem:[%s3 + $0x2e8] sm:$0xff]
    %v453 = vld [vmem:[%s3 + $0x2f0] sm:$0xf]
    %v454 = vld [vmem:[%s3 + $0x2f4] sm:$0xff]
    %v455 = vld [vmem:[%s3 + $0x2fc] sm:$0xff]
    %v456 = vld [vmem:[%s3 + $0x304] sm:$0xff]
    %v457 = vld [vmem:[%s3 + $0x30c] sm:$0xf]
    %v458 = vld [vmem:[%s3 + $0x310] sm:$0xff]
    %v459 = vld [vmem:[%s3 + $0x318] sm:$0xff]
    %v460 = vld [vmem:[%s3 + $0x320] sm:$0xff]
    %v461 = vld [vmem:[%s3 + $0x328] sm:$0xf]
    %v462 = vld [vmem:[%s3 + $0x32c] sm:$0xff]
    %v463 = vld [vmem:[%s3 + $0x334] sm:$0xff]
    %v464 = vld [vmem:[%s3 + $0x33c] sm:$0xff]
    %v465 = vld [vmem:[%s3 + $0x344] sm:$0xf]
    %v466 = vld [vmem:[%s3 + $0x348] sm:$0xff]
    %v467 = vld [vmem:[%s3 + $0x350] sm:$0xff]
    %v468 = vld [vmem:[%s3 + $0x358] sm:$0xff]
    %v469 = vld [vmem:[%s3 + $0x360] sm:$0xf]
    %v470 = vld [vmem:[%s3 + $0x364] sm:$0xff]
    %v471 = vld [vmem:[%s3 + $0x36c] sm:$0xff]
    %v472 = vld [vmem:[%s3 + $0x374] sm:$0xff]
    %v473 = vld [vmem:[%s3 + $0x37c] sm:$0xf]
    %v474 = vld [vmem:[%s3 + $0x380] sm:$0xff]
    %v475 = vld [vmem:[%s3 + $0x388] sm:$0xff]
    %v476 = vld [vmem:[%s3 + $0x390] sm:$0xff]
    %v477 = vld [vmem:[%s3 + $0x398] sm:$0xf]
    %v478 = vld [vmem:[%s3 + $0x39c] sm:$0xff]
    %v479 = vld [vmem:[%s3 + $0x3a4] sm:$0xff]
    %v480 = vld [vmem:[%s3 + $0x3ac] sm:$0xff]
    %v481 = vld [vmem:[%s3 + $0x3b4] sm:$0xf]
    %v482 = vld [vmem:[%s3 + $0x3b8] sm:$0xff]
    %v483 = vld [vmem:[%s3 + $0x3c0] sm:$0xff]
    %v484 = vld [vmem:[%s3 + $0x3c8] sm:$0xff]
    %v485 = vld [vmem:[%s3 + $0x3d0] sm:$0xf]
    %v486 = vld [vmem:[%s3 + $0x3d4] sm:$0xff]
    %v487 = vld [vmem:[%s3 + $0x3dc] sm:$0xff]
    %v488 = vld [vmem:[%s3 + $0x3e4] sm:$0xff]
    %v489 = vld [vmem:[%s3 + $0x3ec] sm:$0xf]
    %v490 = vld [vmem:[%s3 + $0x3f0] sm:$0xff]
    %v491 = vld [vmem:[%s3 + $0x3f8] sm:$0xff]
    %v492 = vld [vmem:[%s3 + $0x400] sm:$0xff]
    %v493 = vld [vmem:[%s3 + $0x408] sm:$0xf]
    %v494 = vld [vmem:[%s3 + $0x40c] sm:$0xff]
    %v495 = vld [vmem:[%s3 + $0x414] sm:$0xff]
    %v496 = vld [vmem:[%s3 + $0x41c] sm:$0xff]
    %v497 = vld [vmem:[%s3 + $0x424] sm:$0xf]
    %v498 = vld [vmem:[%s3 + $0x428] sm:$0xff]
    %v499 = vld [vmem:[%s3 + $0x430] sm:$0xff]
    %v500 = vld [vmem:[%s3 + $0x438] sm:$0xff]
    %v501 = vld [vmem:[%s3 + $0x440] sm:$0xf]
    %v502 = vld [vmem:[%s3 + $0x444] sm:$0xff]
    %v503 = vld [vmem:[%s3 + $0x44c] sm:$0xff]
    %v504 = vld [vmem:[%s3 + $0x454] sm:$0xff]
    %v505 = vld [vmem:[%s3 + $0x45c] sm:$0xf]
    %v506 = vld [vmem:[%s3 + $0x460] sm:$0xff]
    %v507 = vld [vmem:[%s3 + $0x468] sm:$0xff]
    %v508 = vld [vmem:[%s3 + $0x470] sm:$0xff]
    %v509 = vld [vmem:[%s3 + $0x478] sm:$0xf]
    %v510 = vld [vmem:[%s3 + $0x47c] sm:$0xff]
    %v511 = vld [vmem:[%s3 + $0x484] sm:$0xff]
    %v512 = vld [vmem:[%s3 + $0x48c] sm:$0xff]
    %v513 = vld [vmem:[%s3 + $0x494] sm:$0xf]
    %v514 = vld [vmem:[%s3 + $0x498] sm:$0xff]
    %v515 = vld [vmem:[%s3 + $0x4a0] sm:$0xff]
    %v516 = vld [vmem:[%s3 + $0x4a8] sm:$0xff]
    %v517 = vld [vmem:[%s3 + $0x4b0] sm:$0xf]
    %v518 = vld [vmem:[%s3 + $0x4b4] sm:$0xff]
    %v519 = vld [vmem:[%s3 + $0x4bc] sm:$0xff]
    %v520 = vld [vmem:[%s3 + $0x4c4] sm:$0xff]
    %v521 = vld [vmem:[%s3 + $0x4cc] sm:$0xf]
    %v522 = vld [vmem:[%s3 + $0x4d0] sm:$0xff]
    %v523 = vld [vmem:[%s3 + $0x4d8] sm:$0xff]
    %v524 = vld [vmem:[%s3 + $0x4e0] sm:$0xff]
    %v525 = vld [vmem:[%s3 + $0x4e8] sm:$0xf]
    %v526 = vld [vmem:[%s3 + $0x4ec] sm:$0xff]
    %v527 = vld [vmem:[%s3 + $0x4f4] sm:$0xff]
    %v528 = vld [vmem:[%s3 + $0x4fc] sm:$0xff]
    %v529 = vld [vmem:[%s3 + $0x504] sm:$0xf]
    %v530 = vld [vmem:[%s3 + $0x508] sm:$0xff]
    %v531 = vld [vmem:[%s3 + $0x510] sm:$0xff]
    %v532 = vld [vmem:[%s3 + $0x518] sm:$0xff]
    %v533 = vld [vmem:[%s3 + $0x520] sm:$0xf]
    %v534 = vld [vmem:[%s3 + $0x524] sm:$0xff]
    %v535 = vld [vmem:[%s3 + $0x52c] sm:$0xff]
    %v536 = vld [vmem:[%s3 + $0x534] sm:$0xff]
    %v537 = vld [vmem:[%s3 + $0x53c] sm:$0xf]
    %v538 = vld [vmem:[%s3 + $0x540] sm:$0xff]
    %v539 = vld [vmem:[%s3 + $0x548] sm:$0xff]
    %v540 = vld [vmem:[%s3 + $0x550] sm:$0xff]
    %v541 = vld [vmem:[%s3 + $0x558] sm:$0xf]
    %v542 = vld [vmem:[%s3 + $0x55c] sm:$0xff]
    %v543 = vld [vmem:[%s3 + $0x564] sm:$0xff]
    %v544 = vld [vmem:[%s3 + $0x56c] sm:$0xff]
    %v545 = vld [vmem:[%s3 + $0x574] sm:$0xf]
    %v546 = vld [vmem:[%s3 + $0x578] sm:$0xff]
    %v547 = vld [vmem:[%s3 + $0x580] sm:$0xff]
    %v548 = vld [vmem:[%s3 + $0x588] sm:$0xff]
    %v549 = vld [vmem:[%s3 + $0x590] sm:$0xf]
    %v550 = vld [vmem:[%s3 + $0x594] sm:$0xff]
    %v551 = vld [vmem:[%s3 + $0x59c] sm:$0xff]
    %v552 = vld [vmem:[%s3 + $0x5a4] sm:$0xff]
    %v553 = vld [vmem:[%s3 + $0x5ac] sm:$0xf]
    %v554 = vld [vmem:[%s3 + $0x5b0] sm:$0xff]
    %v555 = vld [vmem:[%s3 + $0x5b8] sm:$0xff]
    %v556 = vld [vmem:[%s3 + $0x5c0] sm:$0xff]
    %v557 = vld [vmem:[%s3 + $0x5c8] sm:$0xf]
    %v558 = vld [vmem:[%s3 + $0x5cc] sm:$0xff]
    %v559 = vld [vmem:[%s3 + $0x5d4] sm:$0xff]
    %v560 = vld [vmem:[%s3 + $0x5dc] sm:$0xff]
    %v561 = vld [vmem:[%s3 + $0x5e4] sm:$0xf]
    %v562 = vld [vmem:[%s3 + $0x5e8] sm:$0xff]
    %v563 = vld [vmem:[%s3 + $0x5f0] sm:$0xff]
    %v564 = vld [vmem:[%s3 + $0x5f8] sm:$0xff]
    %v565 = vld [vmem:[%s3 + $0x600] sm:$0xf]
    %v566 = vld [vmem:[%s3 + $0x604] sm:$0xff]
    %v567 = vld [vmem:[%s3 + $0x60c] sm:$0xff]
    %v568 = vld [vmem:[%s3 + $0x614] sm:$0xff]
    %v569 = vld [vmem:[%s3 + $0x61c] sm:$0xf]
    %v570 = vld [vmem:[%s3 + $0x620] sm:$0xff]
    %v571 = vld [vmem:[%s3 + $0x628] sm:$0xff]
    %v572 = vld [vmem:[%s3 + $0x630] sm:$0xff]
    %v573 = vld [vmem:[%s3 + $0x638] sm:$0xf]
    %v574 = vld [vmem:[%s3 + $0x63c] sm:$0xff]
    %v575 = vld [vmem:[%s3 + $0x644] sm:$0xff]
    %v576 = vld [vmem:[%s3 + $0x64c] sm:$0xff]
    %v577 = vld [vmem:[%s3 + $0x654] sm:$0xf]
    %v578 = vld [vmem:[%s3 + $0x658] sm:$0xff]
    %v579 = vld [vmem:[%s3 + $0x660] sm:$0xff]
    %v580 = vld [vmem:[%s3 + $0x668] sm:$0xff]
    %v581 = vld [vmem:[%s3 + $0x670] sm:$0xf]
    %v582 = vld [vmem:[%s3 + $0x674] sm:$0xff]
    %v583 = vld [vmem:[%s3 + $0x67c] sm:$0xff]
    %v584 = vld [vmem:[%s3 + $0x684] sm:$0xff]
    %v585 = vld [vmem:[%s3 + $0x68c] sm:$0xf]
    %v586 = vld [vmem:[%s3 + $0x690] sm:$0xff]
    %v587 = vld [vmem:[%s3 + $0x698] sm:$0xff]
    %v588 = vld [vmem:[%s3 + $0x6a0] sm:$0xff]
    %v589 = vld [vmem:[%s3 + $0x6a8] sm:$0xf]
    %v590 = vld [vmem:[%s3 + $0x6ac] sm:$0xff]
    %v591 = vld [vmem:[%s3 + $0x6b4] sm:$0xff]
    %v592 = vld [vmem:[%s3 + $0x6bc] sm:$0xff]
    %v593 = vld [vmem:[%s3 + $0x6c4] sm:$0xf]
    %v594 = vld [vmem:[%s3 + $0x6c8] sm:$0xff]
    %v595 = vld [vmem:[%s3 + $0x6d0] sm:$0xff]
    %v596 = vld [vmem:[%s3 + $0x6d8] sm:$0xff]
    %v597 = vld [vmem:[%s3 + $0x6e0] sm:$0xf]
    %v598 = vld [vmem:[%s3 + $0x6e4] sm:$0xff]
    %v599 = vld [vmem:[%s3 + $0x6ec] sm:$0xff]
    %v600 = vld [vmem:[%s3 + $0x6f4] sm:$0xff]
    %v601 = vld [vmem:[%s3 + $0x6fc] sm:$0xf]
    %v602 = vld [vmem:[%s3 + $0x700] sm:$0xff]
    %v603 = vld [vmem:[%s3 + $0x708] sm:$0xff]
    %v604 = vld [vmem:[%s3 + $0x710] sm:$0xff]
    %v605 = vld [vmem:[%s3 + $0x718] sm:$0xf]
    %v606 = vld [vmem:[%s3 + $0x71c] sm:$0xff]
    %v607 = vld [vmem:[%s3 + $0x724] sm:$0xff]
    %v608 = vld [vmem:[%s3 + $0x72c] sm:$0xff]
    %v609 = vld [vmem:[%s3 + $0x734] sm:$0xf]
    %v610 = vld [vmem:[%s3 + $0x738] sm:$0xff]
    %v611 = vld [vmem:[%s3 + $0x740] sm:$0xff]
    %v612 = vld [vmem:[%s3 + $0x748] sm:$0xff]
    %v613 = vld [vmem:[%s3 + $0x750] sm:$0xf]
    %v614 = vld [vmem:[%s3 + $0x754] sm:$0xff]
    %v615 = vld [vmem:[%s3 + $0x75c] sm:$0xff]
    %v616 = vld [vmem:[%s3 + $0x764] sm:$0xff]
    %v617 = vld [vmem:[%s3 + $0x76c] sm:$0xf]
    %v618 = vld [vmem:[%s3 + $0x770] sm:$0xff]
    %v619 = vld [vmem:[%s3 + $0x778] sm:$0xff]
    %v620 = vld [vmem:[%s3 + $0x780] sm:$0xff]
    %v621 = vld [vmem:[%s3 + $0x788] sm:$0xf]
    %v622 = vld [vmem:[%s3 + $0x78c] sm:$0xff]
    %v623 = vld [vmem:[%s3 + $0x794] sm:$0xff]
    %v624 = vld [vmem:[%s3 + $0x79c] sm:$0xff]
    %v625 = vld [vmem:[%s3 + $0x7a4] sm:$0xf]
    %v626 = vld [vmem:[%s3 + $0x7a8] sm:$0xff]
    %v627 = vld [vmem:[%s3 + $0x7b0] sm:$0xff]
    %v628 = vld [vmem:[%s3 + $0x7b8] sm:$0xff]
    %v629 = vld [vmem:[%s3 + $0x7c0] sm:$0xf]
    %v630 = vld [vmem:[%s3 + $0x7c4] sm:$0xff]
    %v631 = vld [vmem:[%s3 + $0x7cc] sm:$0xff]
    %v632 = vld [vmem:[%s3 + $0x7d4] sm:$0xff]
    %v633 = vld [vmem:[%s3 + $0x7dc] sm:$0xf]
    %v634 = vld [vmem:[%s3 + $0x7e0] sm:$0xff]
    %v635 = vld [vmem:[%s3 + $0x7e8] sm:$0xff]
    %v636 = vld [vmem:[%s3 + $0x7f0] sm:$0xff]
    %v637 = vld [vmem:[%s3 + $0x7f8] sm:$0xf]
    %v638 = vld [vmem:[%s3 + $0x7fc] sm:$0xff]
    %v639 = vld [vmem:[%s3 + $0x804] sm:$0xff]
    %v640 = vld [vmem:[%s3 + $0x80c] sm:$0xff]
    %v641 = vld [vmem:[%s3 + $0x814] sm:$0xf]
    %v642 = vld [vmem:[%s3 + $0x818] sm:$0xff]
    %v643 = vld [vmem:[%s3 + $0x820] sm:$0xff]
    %v644 = vld [vmem:[%s3 + $0x828] sm:$0xff]
    %v645 = vld [vmem:[%s3 + $0x830] sm:$0xf]
    %v646 = vld [vmem:[%s3 + $0x834] sm:$0xff]
    %v647 = vld [vmem:[%s3 + $0x83c] sm:$0xff]
    %v648 = vld [vmem:[%s3 + $0x844] sm:$0xff]
    %v649 = vld [vmem:[%s3 + $0x84c] sm:$0xf]
    %v650 = vld [vmem:[%s3 + $0x850] sm:$0xff]
    %v651 = vld [vmem:[%s3 + $0x858] sm:$0xff]
    %v652 = vld [vmem:[%s3 + $0x860] sm:$0xff]
    %v653 = vld [vmem:[%s3 + $0x868] sm:$0xf]
    %v654 = vld [vmem:[%s3 + $0x86c] sm:$0xff]
    %v655 = vld [vmem:[%s3 + $0x874] sm:$0xff]
    %v656 = vld [vmem:[%s3 + $0x87c] sm:$0xff]
    %v657 = vld [vmem:[%s3 + $0x884] sm:$0xf]
    %v658 = vld [vmem:[%s3 + $0x888] sm:$0xff]
    %v659 = vld [vmem:[%s3 + $0x890] sm:$0xff]
    %v660 = vld [vmem:[%s3 + $0x898] sm:$0xff]
    %v661 = vld [vmem:[%s3 + $0x8a0] sm:$0xf]
    %v662 = vld [vmem:[%s3 + $0x8a4] sm:$0xff]
    %v663 = vld [vmem:[%s3 + $0x8ac] sm:$0xff]
    %v664 = vld [vmem:[%s3 + $0x8b4] sm:$0xff]
    %v665 = vld [vmem:[%s3 + $0x8bc] sm:$0xf]
    %v666 = vld [vmem:[%s3 + $0x8c0] sm:$0xff]
    %v667 = vld [vmem:[%s3 + $0x8c8] sm:$0xff]
    %v668 = vld [vmem:[%s3 + $0x8d0] sm:$0xff]
    %v669 = vld [vmem:[%s3 + $0x8d8] sm:$0xf]
    %v670 = vld [vmem:[%s3 + $0x8dc] sm:$0xff]
    %v671 = vld [vmem:[%s3 + $0x8e4] sm:$0xff]
    %v672 = vld [vmem:[%s3 + $0x8ec] sm:$0xff]
    %v673 = vld [vmem:[%s3 + $0x8f4] sm:$0xf]
    %v674 = vld [vmem:[%s3 + $0x8f8] sm:$0xff]
    %v675 = vld [vmem:[%s3 + $0x900] sm:$0xff]
    %v676 = vld [vmem:[%s3 + $0x908] sm:$0xff]
    %v677 = vld [vmem:[%s3 + $0x910] sm:$0xf]
    %v678 = vld [vmem:[%s3 + $0x914] sm:$0xff]
    %v679 = vld [vmem:[%s3 + $0x91c] sm:$0xff]
    %v680 = vld [vmem:[%s3 + $0x924] sm:$0xff]
    %v681 = vld [vmem:[%s3 + $0x92c] sm:$0xf]
    %v682 = vld [vmem:[%s3 + $0x930] sm:$0xff]
    %v683 = vld [vmem:[%s3 + $0x938] sm:$0xff]
    %v684 = vld [vmem:[%s3 + $0x940] sm:$0xff]
    %v685 = vld [vmem:[%s3 + $0x948] sm:$0xf]
    %v686 = vld [vmem:[%s3 + $0x94c] sm:$0xff]
    %v687 = vld [vmem:[%s3 + $0x954] sm:$0xff]
    %v688 = vld [vmem:[%s3 + $0x95c] sm:$0xff]
    %v689 = vld [vmem:[%s3 + $0x964] sm:$0xf]
    %v690 = vld [vmem:[%s3 + $0x968] sm:$0xff]
    %v691 = vld [vmem:[%s3 + $0x970] sm:$0xff]
    %v692 = vld [vmem:[%s3 + $0x978] sm:$0xff]
    %v693 = vld [vmem:[%s3 + $0x980] sm:$0xf]
    %v694 = vld [vmem:[%s3 + $0x984] sm:$0xff]
    %v695 = vld [vmem:[%s3 + $0x98c] sm:$0xff]
    %v696 = vld [vmem:[%s3 + $0x994] sm:$0xff]
    %v697 = vld [vmem:[%s3 + $0x99c] sm:$0xf]
    %v698 = vld [vmem:[%s3 + $0x9a0] sm:$0xff]
    %v699 = vld [vmem:[%s3 + $0x9a8] sm:$0xff]
    %v700 = vld [vmem:[%s3 + $0x9b0] sm:$0xff]
    %v701 = vld [vmem:[%s3 + $0x9b8] sm:$0xf]
    %v702 = vld [vmem:[%s3 + $0x9bc] sm:$0xff]
    %v703 = vld [vmem:[%s3 + $0x9c4] sm:$0xff]
    %v704 = vld [vmem:[%s3 + $0x9cc] sm:$0xff]
    %v705 = vld [vmem:[%s3 + $0x9d4] sm:$0xf]
    %v706 = vld [vmem:[%s3 + $0x9d8] sm:$0xff]
    %v707 = vld [vmem:[%s3 + $0x9e0] sm:$0xff]
    %v708 = vld [vmem:[%s3 + $0x9e8] sm:$0xff]
    %v709 = vld [vmem:[%s3 + $0x9f0] sm:$0xf]
    %v710 = vld [vmem:[%s3 + $0x9f4] sm:$0xff]
    %v711 = vld [vmem:[%s3 + $0x9fc] sm:$0xff]
    %v712 = vld [vmem:[%s3 + $0xa04] sm:$0xff]
    %v713 = vld [vmem:[%s3 + $0xa0c] sm:$0xf]
    %v714 = vld [vmem:[%s3 + $0xa10] sm:$0xff]
    %v715 = vld [vmem:[%s3 + $0xa18] sm:$0xff]
    %v716 = vld [vmem:[%s3 + $0xa20] sm:$0xff]
    %v717 = vld [vmem:[%s3 + $0xa28] sm:$0xf]
    %v718 = vld [vmem:[%s3 + $0xa2c] sm:$0xff]
    %v719 = vld [vmem:[%s3 + $0xa34] sm:$0xff]
    %v720 = vld [vmem:[%s3 + $0xa3c] sm:$0xff]
    %v721 = vld [vmem:[%s3 + $0xa44] sm:$0xf]
    %v722 = vld [vmem:[%s3 + $0xa48] sm:$0xff]
    %v723 = vld [vmem:[%s3 + $0xa50] sm:$0xff]
    %v724 = vld [vmem:[%s3 + $0xa58] sm:$0xff]
    %v725 = vld [vmem:[%s3 + $0xa60] sm:$0xf]
    %v726 = vld [vmem:[%s3 + $0xa64] sm:$0xff]
    %v727 = vld [vmem:[%s3 + $0xa6c] sm:$0xff]
    %v728 = vld [vmem:[%s3 + $0xa74] sm:$0xff]
    %v729 = vld [vmem:[%s3 + $0xa7c] sm:$0xf]
    %v730 = vld [vmem:[%s3 + $0xa80] sm:$0xff]
    %v731 = vld [vmem:[%s3 + $0xa88] sm:$0xff]
    %v732 = vld [vmem:[%s3 + $0xa90] sm:$0xff]
    %v733 = vld [vmem:[%s3 + $0xa98] sm:$0xf]
    %v734 = vld [vmem:[%s3 + $0xa9c] sm:$0xff]
    %v735 = vld [vmem:[%s3 + $0xaa4] sm:$0xff]
    %v736 = vld [vmem:[%s3 + $0xaac] sm:$0xff]
    %v737 = vld [vmem:[%s3 + $0xab4] sm:$0xf]
    %v738 = vld [vmem:[%s3 + $0xab8] sm:$0xff]
    %v739 = vld [vmem:[%s3 + $0xac0] sm:$0xff]
    %v740 = vld [vmem:[%s3 + $0xac8] sm:$0xff]
    %v741 = vld [vmem:[%s3 + $0xad0] sm:$0xf]
    %v742 = vld [vmem:[%s3 + $0xad4] sm:$0xff]
    %v743 = vld [vmem:[%s3 + $0xadc] sm:$0xff]
    %v744 = vld [vmem:[%s3 + $0xae4] sm:$0xff]
    %v745 = vld [vmem:[%s3 + $0xaec] sm:$0xf]
    %v746 = vld [vmem:[%s3 + $0xaf0] sm:$0xff]
    %v747 = vld [vmem:[%s3 + $0xaf8] sm:$0xff]
    %v748 = vld [vmem:[%s3 + $0xb00] sm:$0xff]
    %v749 = vld [vmem:[%s3 + $0xb08] sm:$0xf]
    %v750 = vld [vmem:[%s3 + $0xb0c] sm:$0xff]
    %v751 = vld [vmem:[%s3 + $0xb14] sm:$0xff]
    %v752 = vld [vmem:[%s3 + $0xb1c] sm:$0xff]
    %v753 = vld [vmem:[%s3 + $0xb24] sm:$0xf]
    %v754 = vld [vmem:[%s3 + $0xb28] sm:$0xff]
    %v755 = vld [vmem:[%s3 + $0xb30] sm:$0xff]
    %v756 = vld [vmem:[%s3 + $0xb38] sm:$0xff]
    %v757 = vld [vmem:[%s3 + $0xb40] sm:$0xf]
    %v758 = vld [vmem:[%s3 + $0xb44] sm:$0xff]
    %v759 = vld [vmem:[%s3 + $0xb4c] sm:$0xff]
    %v760 = vld [vmem:[%s3 + $0xb54] sm:$0xff]
    %v761 = vld [vmem:[%s3 + $0xb5c] sm:$0xf]
    %v762 = vld [vmem:[%s3 + $0xb60] sm:$0xff]
    %v763 = vld [vmem:[%s3 + $0xb68] sm:$0xff]
    %v764 = vld [vmem:[%s3 + $0xb70] sm:$0xff]
    %v765 = vld [vmem:[%s3 + $0xb78] sm:$0xf]
    %v766 = vld [vmem:[%s3 + $0xb7c] sm:$0xff]
    %v767 = vld [vmem:[%s3 + $0xb84] sm:$0xff]
    %v768 = vld [vmem:[%s3 + $0xb8c] sm:$0xff]
    %v769 = vld [vmem:[%s3 + $0xb94] sm:$0xf]
    %v770 = vld [vmem:[%s3 + $0xb98] sm:$0xff]
    %v771 = vld [vmem:[%s3 + $0xba0] sm:$0xff]
    %v772 = vld [vmem:[%s3 + $0xba8] sm:$0xff]
    %v773 = vld [vmem:[%s3 + $0xbb0] sm:$0xf]
    %v774 = vld [vmem:[%s3 + $0xbb4] sm:$0xff]
    %v775 = vld [vmem:[%s3 + $0xbbc] sm:$0xff]
    %v776 = vld [vmem:[%s3 + $0xbc4] sm:$0xff]
    %v777 = vld [vmem:[%s3 + $0xbcc] sm:$0xf]
    %v778 = vld [vmem:[%s3 + $0xbd0] sm:$0xff]
    %v779 = vld [vmem:[%s3 + $0xbd8] sm:$0xff]
    %v780 = vld [vmem:[%s3 + $0xbe0] sm:$0xff]
    %v781 = vld [vmem:[%s3 + $0xbe8] sm:$0xf]
    %v782 = vld [vmem:[%s3 + $0xbec] sm:$0xff]
    %v783 = vld [vmem:[%s3 + $0xbf4] sm:$0xff]
    %v784 = vld [vmem:[%s3 + $0xbfc] sm:$0xff]
    %v785 = vld [vmem:[%s3 + $0xc04] sm:$0xf]
    %v786 = vld [vmem:[%s3 + $0xc08] sm:$0xff]
    %v787 = vld [vmem:[%s3 + $0xc10] sm:$0xff]
    %v788 = vld [vmem:[%s3 + $0xc18] sm:$0xff]
    %v789 = vld [vmem:[%s3 + $0xc20] sm:$0xf]
    %v790 = vld [vmem:[%s3 + $0xc24] sm:$0xff]
    %v791 = vld [vmem:[%s3 + $0xc2c] sm:$0xff]
    %v792 = vld [vmem:[%s3 + $0xc34] sm:$0xff]
    %v793 = vld [vmem:[%s3 + $0xc3c] sm:$0xf]
    %v794 = vld [vmem:[%s3 + $0xc40] sm:$0xff]
    %v795 = vld [vmem:[%s3 + $0xc48] sm:$0xff]
    %v796 = vld [vmem:[%s3 + $0xc50] sm:$0xff]
    %v797 = vld [vmem:[%s3 + $0xc58] sm:$0xf]
    %v798 = vld [vmem:[%s3 + $0xc5c] sm:$0xff]
    %v799 = vld [vmem:[%s3 + $0xc64] sm:$0xff]
    %v800 = vld [vmem:[%s3 + $0xc6c] sm:$0xff]
    %v801 = vld [vmem:[%s3 + $0xc74] sm:$0xf]
    %v802 = vld [vmem:[%s3 + $0xc78] sm:$0xff]
    %v803 = vld [vmem:[%s3 + $0xc80] sm:$0xff]
    %v804 = vld [vmem:[%s3 + $0xc88] sm:$0xff]
    %v805 = vld [vmem:[%s3 + $0xc90] sm:$0xf]
    %v806 = vld [vmem:[%s3 + $0xc94] sm:$0xff]
    %v807 = vld [vmem:[%s3 + $0xc9c] sm:$0xff]
    %v808 = vld [vmem:[%s3 + $0xca4] sm:$0xff]
    %v809 = vld [vmem:[%s3 + $0xcac] sm:$0xf]
    %v810 = vld [vmem:[%s3 + $0xcb0] sm:$0xff]
    %v811 = vld [vmem:[%s3 + $0xcb8] sm:$0xff]
    %v812 = vld [vmem:[%s3 + $0xcc0] sm:$0xff]
    %v813 = vld [vmem:[%s3 + $0xcc8] sm:$0xf]
    %v814 = vld [vmem:[%s3 + $0xccc] sm:$0xff]
    %v815 = vld [vmem:[%s3 + $0xcd4] sm:$0xff]
    %v816 = vld [vmem:[%s3 + $0xcdc] sm:$0xff]
    %v817 = vld [vmem:[%s3 + $0xce4] sm:$0xf]
    %v818 = vld [vmem:[%s3 + $0xce8] sm:$0xff]
    %v819 = vld [vmem:[%s3 + $0xcf0] sm:$0xff]
    %v820 = vld [vmem:[%s3 + $0xcf8] sm:$0xff]
    %v821 = vld [vmem:[%s3 + $0xd00] sm:$0xf]
    %v822 = vld [vmem:[%s3 + $0xd04] sm:$0xff]
    %v823 = vld [vmem:[%s3 + $0xd0c] sm:$0xff]
    %v824 = vld [vmem:[%s3 + $0xd14] sm:$0xff]
    %v825 = vld [vmem:[%s3 + $0xd1c] sm:$0xf]
    %v826 = vld [vmem:[%s3 + $0xd20] sm:$0xff]
    %v827 = vld [vmem:[%s3 + $0xd28] sm:$0xff]
    %v828 = vld [vmem:[%s3 + $0xd30] sm:$0xff]
    %v829 = vld [vmem:[%s3 + $0xd38] sm:$0xf]
    %v830 = vld [vmem:[%s3 + $0xd3c] sm:$0xff]
    %v831 = vld [vmem:[%s3 + $0xd44] sm:$0xff]
    %v832 = vld [vmem:[%s3 + $0xd4c] sm:$0xff]
    %v833 = vld [vmem:[%s3 + $0xd54] sm:$0xf]
    %v834 = vld [vmem:[%s3 + $0xd58] sm:$0xff]
    %v835 = vld [vmem:[%s3 + $0xd60] sm:$0xff]
    %v836 = vld [vmem:[%s3 + $0xd68] sm:$0xff]
    %v837 = vld [vmem:[%s3 + $0xd70] sm:$0xf]
    %v838 = vld [vmem:[%s3 + $0xd74] sm:$0xff]
    %v839 = vld [vmem:[%s3 + $0xd7c] sm:$0xff]
    %v840 = vld [vmem:[%s3 + $0xd84] sm:$0xff]
    %v841 = vld [vmem:[%s3 + $0xd8c] sm:$0xf]
    %v842 = vld [vmem:[%s3 + $0xd90] sm:$0xff]
    %v843 = vld [vmem:[%s3 + $0xd98] sm:$0xff]
    %v844 = vld [vmem:[%s3 + $0xda0] sm:$0xff]
    %v845 = vld [vmem:[%s3 + $0xda8] sm:$0xf]
    %v846 = vld [vmem:[%s3 + $0xdac] sm:$0xff]
    %v847 = vld [vmem:[%s3 + $0xdb4] sm:$0xff]
    %v848 = vld [vmem:[%s3 + $0xdbc] sm:$0xff]
    %v849 = vld [vmem:[%s3 + $0xdc4] sm:$0xf]
    %v850 = vld [vmem:[%s3 + $0xdc8] sm:$0xff]
    %v851 = vld [vmem:[%s3 + $0xdd0] sm:$0xff]
    %v852 = vld [vmem:[%s3 + $0xdd8] sm:$0xff]
    %v853 = vld [vmem:[%s3 + $0xde0] sm:$0xf]
    %v854 = vld [vmem:[%s3 + $0xde4] sm:$0xff]
    %v855 = vld [vmem:[%s3 + $0xdec] sm:$0xff]
    %v856 = vld [vmem:[%s3 + $0xdf4] sm:$0xff]
    %v857 = vld [vmem:[%s3 + $0xdfc] sm:$0xf]
    %v858 = vld [vmem:[%s4] sm:$0xff]
    %v860 = vlaneseq
    %v861 = vshrl.u32 %v860, 7
    %v862 = vsub.s32 0, %v861
    %v863 = vrot.slane %v858, %v862
    %v864 = vlaneseq
    %v865 = vshrl.u32 %v864, 7
    %v866 = vsub.s32 1, %v865
    %v867 = vrot.slane %v858, %v866
    %v868 = vlaneseq
    %v869 = vshrl.u32 %v868, 7
    %v870 = vsub.s32 2, %v869
    %v871 = vrot.slane %v858, %v870
    %v872 = vlaneseq
    %v873 = vshrl.u32 %v872, 7
    %v874 = vsub.s32 3, %v873
    %v875 = vrot.slane %v858, %v874
    %v876 = vlaneseq
    %v877 = vshrl.u32 %v876, 7
    %v878 = vsub.s32 4, %v877
    %v879 = vrot.slane %v858, %v878
    %v880 = vlaneseq
    %v881 = vshrl.u32 %v880, 7
    %v882 = vsub.s32 5, %v881
    %v883 = vrot.slane %v858, %v882
    %v884 = vlaneseq
    %v885 = vshrl.u32 %v884, 7
    %v886 = vsub.s32 6, %v885
    %v887 = vrot.slane %v858, %v886
    %v1407 = vunpack.c.l.b16 %v346
    %v1408 = vunpack.c.h.b16 %v346
    %v1409 = vunpack.c.l.b16 %v347
    %v1410 = vunpack.c.h.b16 %v347
    %v1411 = vunpack.c.l.b16 %v348
    %v1412 = vunpack.c.h.b16 %v348
    %v1413 = vunpack.c.l.b16 %v349
    %v1414 = vunpack.c.l.b16 %v350
    %v1415 = vunpack.c.h.b16 %v350
    %v1416 = vunpack.c.l.b16 %v351
    %v1417 = vunpack.c.h.b16 %v351
    %v1418 = vunpack.c.l.b16 %v352
    %v1419 = vunpack.c.h.b16 %v352
    %v1420 = vunpack.c.l.b16 %v353
    %v1421 = vunpack.c.l.b16 %v354
    %v1422 = vunpack.c.h.b16 %v354
    %v1423 = vunpack.c.l.b16 %v355
    %v1424 = vunpack.c.h.b16 %v355
    %v1425 = vunpack.c.l.b16 %v356
    %v1426 = vunpack.c.h.b16 %v356
    %v1427 = vunpack.c.l.b16 %v357
    %v1428 = vunpack.c.l.b16 %v358
    %v1429 = vunpack.c.h.b16 %v358
    %v1430 = vunpack.c.l.b16 %v359
    %v1431 = vunpack.c.h.b16 %v359
    %v1432 = vunpack.c.l.b16 %v360
    %v1433 = vunpack.c.h.b16 %v360
    %v1434 = vunpack.c.l.b16 %v361
    %v1435 = vunpack.c.l.b16 %v362
    %v1436 = vunpack.c.h.b16 %v362
    %v1437 = vunpack.c.l.b16 %v363
    %v1438 = vunpack.c.h.b16 %v363
    %v1439 = vunpack.c.l.b16 %v364
    %v1440 = vunpack.c.h.b16 %v364
    %v1441 = vunpack.c.l.b16 %v365
    %v1442 = vunpack.c.l.b16 %v366
    %v1443 = vunpack.c.h.b16 %v366
    %v1444 = vunpack.c.l.b16 %v367
    %v1445 = vunpack.c.h.b16 %v367
    %v1446 = vunpack.c.l.b16 %v368
    %v1447 = vunpack.c.h.b16 %v368
    %v1448 = vunpack.c.l.b16 %v369
    %v1449 = vunpack.c.l.b16 %v370
    %v1450 = vunpack.c.h.b16 %v370
    %v1451 = vunpack.c.l.b16 %v371
    %v1452 = vunpack.c.h.b16 %v371
    %v1453 = vunpack.c.l.b16 %v372
    %v1454 = vunpack.c.h.b16 %v372
    %v1455 = vunpack.c.l.b16 %v373
    %v1456 = vunpack.c.l.b16 %v374
    %v1457 = vunpack.c.h.b16 %v374
    %v1458 = vunpack.c.l.b16 %v375
    %v1459 = vunpack.c.h.b16 %v375
    %v1460 = vunpack.c.l.b16 %v376
    %v1461 = vunpack.c.h.b16 %v376
    %v1462 = vunpack.c.l.b16 %v377
    %v1463 = vunpack.c.l.b16 %v378
    %v1464 = vunpack.c.h.b16 %v378
    %v1465 = vunpack.c.l.b16 %v379
    %v1466 = vunpack.c.h.b16 %v379
    %v1467 = vunpack.c.l.b16 %v380
    %v1468 = vunpack.c.h.b16 %v380
    %v1469 = vunpack.c.l.b16 %v381
    %v1470 = vunpack.c.l.b16 %v382
    %v1471 = vunpack.c.h.b16 %v382
    %v1472 = vunpack.c.l.b16 %v383
    %v1473 = vunpack.c.h.b16 %v383
    %v1474 = vunpack.c.l.b16 %v384
    %v1475 = vunpack.c.h.b16 %v384
    %v1476 = vunpack.c.l.b16 %v385
    %v1477 = vunpack.c.l.b16 %v386
    %v1478 = vunpack.c.h.b16 %v386
    %v1479 = vunpack.c.l.b16 %v387
    %v1480 = vunpack.c.h.b16 %v387
    %v1481 = vunpack.c.l.b16 %v388
    %v1482 = vunpack.c.h.b16 %v388
    %v1483 = vunpack.c.l.b16 %v389
    %v1484 = vunpack.c.l.b16 %v390
    %v1485 = vunpack.c.h.b16 %v390
    %v1486 = vunpack.c.l.b16 %v391
    %v1487 = vunpack.c.h.b16 %v391
    %v1488 = vunpack.c.l.b16 %v392
    %v1489 = vunpack.c.h.b16 %v392
    %v1490 = vunpack.c.l.b16 %v393
    %v1491 = vunpack.c.l.b16 %v394
    %v1492 = vunpack.c.h.b16 %v394
    %v1493 = vunpack.c.l.b16 %v395
    %v1494 = vunpack.c.h.b16 %v395
    %v1495 = vunpack.c.l.b16 %v396
    %v1496 = vunpack.c.h.b16 %v396
    %v1497 = vunpack.c.l.b16 %v397
    %v1498 = vunpack.c.l.b16 %v398
    %v1499 = vunpack.c.h.b16 %v398
    %v1500 = vunpack.c.l.b16 %v399
    %v1501 = vunpack.c.h.b16 %v399
    %v1502 = vunpack.c.l.b16 %v400
    %v1503 = vunpack.c.h.b16 %v400
    %v1504 = vunpack.c.l.b16 %v401
    %v1505 = vunpack.c.l.b16 %v402
    %v1506 = vunpack.c.h.b16 %v402
    %v1507 = vunpack.c.l.b16 %v403
    %v1508 = vunpack.c.h.b16 %v403
    %v1509 = vunpack.c.l.b16 %v404
    %v1510 = vunpack.c.h.b16 %v404
    %v1511 = vunpack.c.l.b16 %v405
    %v1512 = vunpack.c.l.b16 %v406
    %v1513 = vunpack.c.h.b16 %v406
    %v1514 = vunpack.c.l.b16 %v407
    %v1515 = vunpack.c.h.b16 %v407
    %v1516 = vunpack.c.l.b16 %v408
    %v1517 = vunpack.c.h.b16 %v408
    %v1518 = vunpack.c.l.b16 %v409
    %v1519 = vunpack.c.l.b16 %v410
    %v1520 = vunpack.c.h.b16 %v410
    %v1521 = vunpack.c.l.b16 %v411
    %v1522 = vunpack.c.h.b16 %v411
    %v1523 = vunpack.c.l.b16 %v412
    %v1524 = vunpack.c.h.b16 %v412
    %v1525 = vunpack.c.l.b16 %v413
    %v1526 = vunpack.c.l.b16 %v414
    %v1527 = vunpack.c.h.b16 %v414
    %v1528 = vunpack.c.l.b16 %v415
    %v1529 = vunpack.c.h.b16 %v415
    %v1530 = vunpack.c.l.b16 %v416
    %v1531 = vunpack.c.h.b16 %v416
    %v1532 = vunpack.c.l.b16 %v417
    %v1533 = vunpack.c.l.b16 %v418
    %v1534 = vunpack.c.h.b16 %v418
    %v1535 = vunpack.c.l.b16 %v419
    %v1536 = vunpack.c.h.b16 %v419
    %v1537 = vunpack.c.l.b16 %v420
    %v1538 = vunpack.c.h.b16 %v420
    %v1539 = vunpack.c.l.b16 %v421
    %v1540 = vunpack.c.l.b16 %v422
    %v1541 = vunpack.c.h.b16 %v422
    %v1542 = vunpack.c.l.b16 %v423
    %v1543 = vunpack.c.h.b16 %v423
    %v1544 = vunpack.c.l.b16 %v424
    %v1545 = vunpack.c.h.b16 %v424
    %v1546 = vunpack.c.l.b16 %v425
    %v1547 = vunpack.c.l.b16 %v426
    %v1548 = vunpack.c.h.b16 %v426
    %v1549 = vunpack.c.l.b16 %v427
    %v1550 = vunpack.c.h.b16 %v427
    %v1551 = vunpack.c.l.b16 %v428
    %v1552 = vunpack.c.h.b16 %v428
    %v1553 = vunpack.c.l.b16 %v429
    %v1554 = vunpack.c.l.b16 %v430
    %v1555 = vunpack.c.h.b16 %v430
    %v1556 = vunpack.c.l.b16 %v431
    %v1557 = vunpack.c.h.b16 %v431
    %v1558 = vunpack.c.l.b16 %v432
    %v1559 = vunpack.c.h.b16 %v432
    %v1560 = vunpack.c.l.b16 %v433
    %v1561 = vunpack.c.l.b16 %v434
    %v1562 = vunpack.c.h.b16 %v434
    %v1563 = vunpack.c.l.b16 %v435
    %v1564 = vunpack.c.h.b16 %v435
    %v1565 = vunpack.c.l.b16 %v436
    %v1566 = vunpack.c.h.b16 %v436
    %v1567 = vunpack.c.l.b16 %v437
    %v1568 = vunpack.c.l.b16 %v438
    %v1569 = vunpack.c.h.b16 %v438
    %v1570 = vunpack.c.l.b16 %v439
    %v1571 = vunpack.c.h.b16 %v439
    %v1572 = vunpack.c.l.b16 %v440
    %v1573 = vunpack.c.h.b16 %v440
    %v1574 = vunpack.c.l.b16 %v441
    %v1575 = vunpack.c.l.b16 %v442
    %v1576 = vunpack.c.h.b16 %v442
    %v1577 = vunpack.c.l.b16 %v443
    %v1578 = vunpack.c.h.b16 %v443
    %v1579 = vunpack.c.l.b16 %v444
    %v1580 = vunpack.c.h.b16 %v444
    %v1581 = vunpack.c.l.b16 %v445
    %v1582 = vunpack.c.l.b16 %v446
    %v1583 = vunpack.c.h.b16 %v446
    %v1584 = vunpack.c.l.b16 %v447
    %v1585 = vunpack.c.h.b16 %v447
    %v1586 = vunpack.c.l.b16 %v448
    %v1587 = vunpack.c.h.b16 %v448
    %v1588 = vunpack.c.l.b16 %v449
    %v1589 = vunpack.c.l.b16 %v450
    %v1590 = vunpack.c.h.b16 %v450
    %v1591 = vunpack.c.l.b16 %v451
    %v1592 = vunpack.c.h.b16 %v451
    %v1593 = vunpack.c.l.b16 %v452
    %v1594 = vunpack.c.h.b16 %v452
    %v1595 = vunpack.c.l.b16 %v453
    %v1596 = vunpack.c.l.b16 %v454
    %v1597 = vunpack.c.h.b16 %v454
    %v1598 = vunpack.c.l.b16 %v455
    %v1599 = vunpack.c.h.b16 %v455
    %v1600 = vunpack.c.l.b16 %v456
    %v1601 = vunpack.c.h.b16 %v456
    %v1602 = vunpack.c.l.b16 %v457
    %v1603 = vunpack.c.l.b16 %v458
    %v1604 = vunpack.c.h.b16 %v458
    %v1605 = vunpack.c.l.b16 %v459
    %v1606 = vunpack.c.h.b16 %v459
    %v1607 = vunpack.c.l.b16 %v460
    %v1608 = vunpack.c.h.b16 %v460
    %v1609 = vunpack.c.l.b16 %v461
    %v1610 = vunpack.c.l.b16 %v462
    %v1611 = vunpack.c.h.b16 %v462
    %v1612 = vunpack.c.l.b16 %v463
    %v1613 = vunpack.c.h.b16 %v463
    %v1614 = vunpack.c.l.b16 %v464
    %v1615 = vunpack.c.h.b16 %v464
    %v1616 = vunpack.c.l.b16 %v465
    %v1617 = vunpack.c.l.b16 %v466
    %v1618 = vunpack.c.h.b16 %v466
    %v1619 = vunpack.c.l.b16 %v467
    %v1620 = vunpack.c.h.b16 %v467
    %v1621 = vunpack.c.l.b16 %v468
    %v1622 = vunpack.c.h.b16 %v468
    %v1623 = vunpack.c.l.b16 %v469
    %v1624 = vunpack.c.l.b16 %v470
    %v1625 = vunpack.c.h.b16 %v470
    %v1626 = vunpack.c.l.b16 %v471
    %v1627 = vunpack.c.h.b16 %v471
    %v1628 = vunpack.c.l.b16 %v472
    %v1629 = vunpack.c.h.b16 %v472
    %v1630 = vunpack.c.l.b16 %v473
    %v1631 = vunpack.c.l.b16 %v474
    %v1632 = vunpack.c.h.b16 %v474
    %v1633 = vunpack.c.l.b16 %v475
    %v1634 = vunpack.c.h.b16 %v475
    %v1635 = vunpack.c.l.b16 %v476
    %v1636 = vunpack.c.h.b16 %v476
    %v1637 = vunpack.c.l.b16 %v477
    %v1638 = vunpack.c.l.b16 %v478
    %v1639 = vunpack.c.h.b16 %v478
    %v1640 = vunpack.c.l.b16 %v479
    %v1641 = vunpack.c.h.b16 %v479
    %v1642 = vunpack.c.l.b16 %v480
    %v1643 = vunpack.c.h.b16 %v480
    %v1644 = vunpack.c.l.b16 %v481
    %v1645 = vunpack.c.l.b16 %v482
    %v1646 = vunpack.c.h.b16 %v482
    %v1647 = vunpack.c.l.b16 %v483
    %v1648 = vunpack.c.h.b16 %v483
    %v1649 = vunpack.c.l.b16 %v484
    %v1650 = vunpack.c.h.b16 %v484
    %v1651 = vunpack.c.l.b16 %v485
    %v1652 = vunpack.c.l.b16 %v486
    %v1653 = vunpack.c.h.b16 %v486
    %v1654 = vunpack.c.l.b16 %v487
    %v1655 = vunpack.c.h.b16 %v487
    %v1656 = vunpack.c.l.b16 %v488
    %v1657 = vunpack.c.h.b16 %v488
    %v1658 = vunpack.c.l.b16 %v489
    %v1659 = vunpack.c.l.b16 %v490
    %v1660 = vunpack.c.h.b16 %v490
    %v1661 = vunpack.c.l.b16 %v491
    %v1662 = vunpack.c.h.b16 %v491
    %v1663 = vunpack.c.l.b16 %v492
    %v1664 = vunpack.c.h.b16 %v492
    %v1665 = vunpack.c.l.b16 %v493
    %v1666 = vunpack.c.l.b16 %v494
    %v1667 = vunpack.c.h.b16 %v494
    %v1668 = vunpack.c.l.b16 %v495
    %v1669 = vunpack.c.h.b16 %v495
    %v1670 = vunpack.c.l.b16 %v496
    %v1671 = vunpack.c.h.b16 %v496
    %v1672 = vunpack.c.l.b16 %v497
    %v1673 = vunpack.c.l.b16 %v498
    %v1674 = vunpack.c.h.b16 %v498
    %v1675 = vunpack.c.l.b16 %v499
    %v1676 = vunpack.c.h.b16 %v499
    %v1677 = vunpack.c.l.b16 %v500
    %v1678 = vunpack.c.h.b16 %v500
    %v1679 = vunpack.c.l.b16 %v501
    %v1680 = vunpack.c.l.b16 %v502
    %v1681 = vunpack.c.h.b16 %v502
    %v1682 = vunpack.c.l.b16 %v503
    %v1683 = vunpack.c.h.b16 %v503
    %v1684 = vunpack.c.l.b16 %v504
    %v1685 = vunpack.c.h.b16 %v504
    %v1686 = vunpack.c.l.b16 %v505
    %v1687 = vunpack.c.l.b16 %v506
    %v1688 = vunpack.c.h.b16 %v506
    %v1689 = vunpack.c.l.b16 %v507
    %v1690 = vunpack.c.h.b16 %v507
    %v1691 = vunpack.c.l.b16 %v508
    %v1692 = vunpack.c.h.b16 %v508
    %v1693 = vunpack.c.l.b16 %v509
    %v1694 = vunpack.c.l.b16 %v510
    %v1695 = vunpack.c.h.b16 %v510
    %v1696 = vunpack.c.l.b16 %v511
    %v1697 = vunpack.c.h.b16 %v511
    %v1698 = vunpack.c.l.b16 %v512
    %v1699 = vunpack.c.h.b16 %v512
    %v1700 = vunpack.c.l.b16 %v513
    %v1701 = vunpack.c.l.b16 %v514
    %v1702 = vunpack.c.h.b16 %v514
    %v1703 = vunpack.c.l.b16 %v515
    %v1704 = vunpack.c.h.b16 %v515
    %v1705 = vunpack.c.l.b16 %v516
    %v1706 = vunpack.c.h.b16 %v516
    %v1707 = vunpack.c.l.b16 %v517
    %v1708 = vunpack.c.l.b16 %v518
    %v1709 = vunpack.c.h.b16 %v518
    %v1710 = vunpack.c.l.b16 %v519
    %v1711 = vunpack.c.h.b16 %v519
    %v1712 = vunpack.c.l.b16 %v520
    %v1713 = vunpack.c.h.b16 %v520
    %v1714 = vunpack.c.l.b16 %v521
    %v1715 = vunpack.c.l.b16 %v522
    %v1716 = vunpack.c.h.b16 %v522
    %v1717 = vunpack.c.l.b16 %v523
    %v1718 = vunpack.c.h.b16 %v523
    %v1719 = vunpack.c.l.b16 %v524
    %v1720 = vunpack.c.h.b16 %v524
    %v1721 = vunpack.c.l.b16 %v525
    %v1722 = vunpack.c.l.b16 %v526
    %v1723 = vunpack.c.h.b16 %v526
    %v1724 = vunpack.c.l.b16 %v527
    %v1725 = vunpack.c.h.b16 %v527
    %v1726 = vunpack.c.l.b16 %v528
    %v1727 = vunpack.c.h.b16 %v528
    %v1728 = vunpack.c.l.b16 %v529
    %v1729 = vunpack.c.l.b16 %v530
    %v1730 = vunpack.c.h.b16 %v530
    %v1731 = vunpack.c.l.b16 %v531
    %v1732 = vunpack.c.h.b16 %v531
    %v1733 = vunpack.c.l.b16 %v532
    %v1734 = vunpack.c.h.b16 %v532
    %v1735 = vunpack.c.l.b16 %v533
    %v1736 = vunpack.c.l.b16 %v534
    %v1737 = vunpack.c.h.b16 %v534
    %v1738 = vunpack.c.l.b16 %v535
    %v1739 = vunpack.c.h.b16 %v535
    %v1740 = vunpack.c.l.b16 %v536
    %v1741 = vunpack.c.h.b16 %v536
    %v1742 = vunpack.c.l.b16 %v537
    %v1743 = vunpack.c.l.b16 %v538
    %v1744 = vunpack.c.h.b16 %v538
    %v1745 = vunpack.c.l.b16 %v539
    %v1746 = vunpack.c.h.b16 %v539
    %v1747 = vunpack.c.l.b16 %v540
    %v1748 = vunpack.c.h.b16 %v540
    %v1749 = vunpack.c.l.b16 %v541
    %v1750 = vunpack.c.l.b16 %v542
    %v1751 = vunpack.c.h.b16 %v542
    %v1752 = vunpack.c.l.b16 %v543
    %v1753 = vunpack.c.h.b16 %v543
    %v1754 = vunpack.c.l.b16 %v544
    %v1755 = vunpack.c.h.b16 %v544
    %v1756 = vunpack.c.l.b16 %v545
    %v1757 = vunpack.c.l.b16 %v546
    %v1758 = vunpack.c.h.b16 %v546
    %v1759 = vunpack.c.l.b16 %v547
    %v1760 = vunpack.c.h.b16 %v547
    %v1761 = vunpack.c.l.b16 %v548
    %v1762 = vunpack.c.h.b16 %v548
    %v1763 = vunpack.c.l.b16 %v549
    %v1764 = vunpack.c.l.b16 %v550
    %v1765 = vunpack.c.h.b16 %v550
    %v1766 = vunpack.c.l.b16 %v551
    %v1767 = vunpack.c.h.b16 %v551
    %v1768 = vunpack.c.l.b16 %v552
    %v1769 = vunpack.c.h.b16 %v552
    %v1770 = vunpack.c.l.b16 %v553
    %v1771 = vunpack.c.l.b16 %v554
    %v1772 = vunpack.c.h.b16 %v554
    %v1773 = vunpack.c.l.b16 %v555
    %v1774 = vunpack.c.h.b16 %v555
    %v1775 = vunpack.c.l.b16 %v556
    %v1776 = vunpack.c.h.b16 %v556
    %v1777 = vunpack.c.l.b16 %v557
    %v1778 = vunpack.c.l.b16 %v558
    %v1779 = vunpack.c.h.b16 %v558
    %v1780 = vunpack.c.l.b16 %v559
    %v1781 = vunpack.c.h.b16 %v559
    %v1782 = vunpack.c.l.b16 %v560
    %v1783 = vunpack.c.h.b16 %v560
    %v1784 = vunpack.c.l.b16 %v561
    %v1785 = vunpack.c.l.b16 %v562
    %v1786 = vunpack.c.h.b16 %v562
    %v1787 = vunpack.c.l.b16 %v563
    %v1788 = vunpack.c.h.b16 %v563
    %v1789 = vunpack.c.l.b16 %v564
    %v1790 = vunpack.c.h.b16 %v564
    %v1791 = vunpack.c.l.b16 %v565
    %v1792 = vunpack.c.l.b16 %v566
    %v1793 = vunpack.c.h.b16 %v566
    %v1794 = vunpack.c.l.b16 %v567
    %v1795 = vunpack.c.h.b16 %v567
    %v1796 = vunpack.c.l.b16 %v568
    %v1797 = vunpack.c.h.b16 %v568
    %v1798 = vunpack.c.l.b16 %v569
    %v1799 = vunpack.c.l.b16 %v570
    %v1800 = vunpack.c.h.b16 %v570
    %v1801 = vunpack.c.l.b16 %v571
    %v1802 = vunpack.c.h.b16 %v571
    %v1803 = vunpack.c.l.b16 %v572
    %v1804 = vunpack.c.h.b16 %v572
    %v1805 = vunpack.c.l.b16 %v573
    %v1806 = vunpack.c.l.b16 %v574
    %v1807 = vunpack.c.h.b16 %v574
    %v1808 = vunpack.c.l.b16 %v575
    %v1809 = vunpack.c.h.b16 %v575
    %v1810 = vunpack.c.l.b16 %v576
    %v1811 = vunpack.c.h.b16 %v576
    %v1812 = vunpack.c.l.b16 %v577
    %v1813 = vunpack.c.l.b16 %v578
    %v1814 = vunpack.c.h.b16 %v578
    %v1815 = vunpack.c.l.b16 %v579
    %v1816 = vunpack.c.h.b16 %v579
    %v1817 = vunpack.c.l.b16 %v580
    %v1818 = vunpack.c.h.b16 %v580
    %v1819 = vunpack.c.l.b16 %v581
    %v1820 = vunpack.c.l.b16 %v582
    %v1821 = vunpack.c.h.b16 %v582
    %v1822 = vunpack.c.l.b16 %v583
    %v1823 = vunpack.c.h.b16 %v583
    %v1824 = vunpack.c.l.b16 %v584
    %v1825 = vunpack.c.h.b16 %v584
    %v1826 = vunpack.c.l.b16 %v585
    %v1827 = vunpack.c.l.b16 %v586
    %v1828 = vunpack.c.h.b16 %v586
    %v1829 = vunpack.c.l.b16 %v587
    %v1830 = vunpack.c.h.b16 %v587
    %v1831 = vunpack.c.l.b16 %v588
    %v1832 = vunpack.c.h.b16 %v588
    %v1833 = vunpack.c.l.b16 %v589
    %v1834 = vunpack.c.l.b16 %v590
    %v1835 = vunpack.c.h.b16 %v590
    %v1836 = vunpack.c.l.b16 %v591
    %v1837 = vunpack.c.h.b16 %v591
    %v1838 = vunpack.c.l.b16 %v592
    %v1839 = vunpack.c.h.b16 %v592
    %v1840 = vunpack.c.l.b16 %v593
    %v1841 = vunpack.c.l.b16 %v594
    %v1842 = vunpack.c.h.b16 %v594
    %v1843 = vunpack.c.l.b16 %v595
    %v1844 = vunpack.c.h.b16 %v595
    %v1845 = vunpack.c.l.b16 %v596
    %v1846 = vunpack.c.h.b16 %v596
    %v1847 = vunpack.c.l.b16 %v597
    %v1848 = vunpack.c.l.b16 %v598
    %v1849 = vunpack.c.h.b16 %v598
    %v1850 = vunpack.c.l.b16 %v599
    %v1851 = vunpack.c.h.b16 %v599
    %v1852 = vunpack.c.l.b16 %v600
    %v1853 = vunpack.c.h.b16 %v600
    %v1854 = vunpack.c.l.b16 %v601
    %v1855 = vunpack.c.l.b16 %v602
    %v1856 = vunpack.c.h.b16 %v602
    %v1857 = vunpack.c.l.b16 %v603
    %v1858 = vunpack.c.h.b16 %v603
    %v1859 = vunpack.c.l.b16 %v604
    %v1860 = vunpack.c.h.b16 %v604
    %v1861 = vunpack.c.l.b16 %v605
    %v1862 = vunpack.c.l.b16 %v606
    %v1863 = vunpack.c.h.b16 %v606
    %v1864 = vunpack.c.l.b16 %v607
    %v1865 = vunpack.c.h.b16 %v607
    %v1866 = vunpack.c.l.b16 %v608
    %v1867 = vunpack.c.h.b16 %v608
    %v1868 = vunpack.c.l.b16 %v609
    %v1869 = vunpack.c.l.b16 %v610
    %v1870 = vunpack.c.h.b16 %v610
    %v1871 = vunpack.c.l.b16 %v611
    %v1872 = vunpack.c.h.b16 %v611
    %v1873 = vunpack.c.l.b16 %v612
    %v1874 = vunpack.c.h.b16 %v612
    %v1875 = vunpack.c.l.b16 %v613
    %v1876 = vunpack.c.l.b16 %v614
    %v1877 = vunpack.c.h.b16 %v614
    %v1878 = vunpack.c.l.b16 %v615
    %v1879 = vunpack.c.h.b16 %v615
    %v1880 = vunpack.c.l.b16 %v616
    %v1881 = vunpack.c.h.b16 %v616
    %v1882 = vunpack.c.l.b16 %v617
    %v1883 = vunpack.c.l.b16 %v618
    %v1884 = vunpack.c.h.b16 %v618
    %v1885 = vunpack.c.l.b16 %v619
    %v1886 = vunpack.c.h.b16 %v619
    %v1887 = vunpack.c.l.b16 %v620
    %v1888 = vunpack.c.h.b16 %v620
    %v1889 = vunpack.c.l.b16 %v621
    %v1890 = vunpack.c.l.b16 %v622
    %v1891 = vunpack.c.h.b16 %v622
    %v1892 = vunpack.c.l.b16 %v623
    %v1893 = vunpack.c.h.b16 %v623
    %v1894 = vunpack.c.l.b16 %v624
    %v1895 = vunpack.c.h.b16 %v624
    %v1896 = vunpack.c.l.b16 %v625
    %v1897 = vunpack.c.l.b16 %v626
    %v1898 = vunpack.c.h.b16 %v626
    %v1899 = vunpack.c.l.b16 %v627
    %v1900 = vunpack.c.h.b16 %v627
    %v1901 = vunpack.c.l.b16 %v628
    %v1902 = vunpack.c.h.b16 %v628
    %v1903 = vunpack.c.l.b16 %v629
    %v1904 = vunpack.c.l.b16 %v630
    %v1905 = vunpack.c.h.b16 %v630
    %v1906 = vunpack.c.l.b16 %v631
    %v1907 = vunpack.c.h.b16 %v631
    %v1908 = vunpack.c.l.b16 %v632
    %v1909 = vunpack.c.h.b16 %v632
    %v1910 = vunpack.c.l.b16 %v633
    %v1911 = vunpack.c.l.b16 %v634
    %v1912 = vunpack.c.h.b16 %v634
    %v1913 = vunpack.c.l.b16 %v635
    %v1914 = vunpack.c.h.b16 %v635
    %v1915 = vunpack.c.l.b16 %v636
    %v1916 = vunpack.c.h.b16 %v636
    %v1917 = vunpack.c.l.b16 %v637
    %v1918 = vunpack.c.l.b16 %v638
    %v1919 = vunpack.c.h.b16 %v638
    %v1920 = vunpack.c.l.b16 %v639
    %v1921 = vunpack.c.h.b16 %v639
    %v1922 = vunpack.c.l.b16 %v640
    %v1923 = vunpack.c.h.b16 %v640
    %v1924 = vunpack.c.l.b16 %v641
    %v1925 = vunpack.c.l.b16 %v642
    %v1926 = vunpack.c.h.b16 %v642
    %v1927 = vunpack.c.l.b16 %v643
    %v1928 = vunpack.c.h.b16 %v643
    %v1929 = vunpack.c.l.b16 %v644
    %v1930 = vunpack.c.h.b16 %v644
    %v1931 = vunpack.c.l.b16 %v645
    %v1932 = vunpack.c.l.b16 %v646
    %v1933 = vunpack.c.h.b16 %v646
    %v1934 = vunpack.c.l.b16 %v647
    %v1935 = vunpack.c.h.b16 %v647
    %v1936 = vunpack.c.l.b16 %v648
    %v1937 = vunpack.c.h.b16 %v648
    %v1938 = vunpack.c.l.b16 %v649
    %v1939 = vunpack.c.l.b16 %v650
    %v1940 = vunpack.c.h.b16 %v650
    %v1941 = vunpack.c.l.b16 %v651
    %v1942 = vunpack.c.h.b16 %v651
    %v1943 = vunpack.c.l.b16 %v652
    %v1944 = vunpack.c.h.b16 %v652
    %v1945 = vunpack.c.l.b16 %v653
    %v1946 = vunpack.c.l.b16 %v654
    %v1947 = vunpack.c.h.b16 %v654
    %v1948 = vunpack.c.l.b16 %v655
    %v1949 = vunpack.c.h.b16 %v655
    %v1950 = vunpack.c.l.b16 %v656
    %v1951 = vunpack.c.h.b16 %v656
    %v1952 = vunpack.c.l.b16 %v657
    %v1953 = vunpack.c.l.b16 %v658
    %v1954 = vunpack.c.h.b16 %v658
    %v1955 = vunpack.c.l.b16 %v659
    %v1956 = vunpack.c.h.b16 %v659
    %v1957 = vunpack.c.l.b16 %v660
    %v1958 = vunpack.c.h.b16 %v660
    %v1959 = vunpack.c.l.b16 %v661
    %v1960 = vunpack.c.l.b16 %v662
    %v1961 = vunpack.c.h.b16 %v662
    %v1962 = vunpack.c.l.b16 %v663
    %v1963 = vunpack.c.h.b16 %v663
    %v1964 = vunpack.c.l.b16 %v664
    %v1965 = vunpack.c.h.b16 %v664
    %v1966 = vunpack.c.l.b16 %v665
    %v1967 = vunpack.c.l.b16 %v666
    %v1968 = vunpack.c.h.b16 %v666
    %v1969 = vunpack.c.l.b16 %v667
    %v1970 = vunpack.c.h.b16 %v667
    %v1971 = vunpack.c.l.b16 %v668
    %v1972 = vunpack.c.h.b16 %v668
    %v1973 = vunpack.c.l.b16 %v669
    %v1974 = vunpack.c.l.b16 %v670
    %v1975 = vunpack.c.h.b16 %v670
    %v1976 = vunpack.c.l.b16 %v671
    %v1977 = vunpack.c.h.b16 %v671
    %v1978 = vunpack.c.l.b16 %v672
    %v1979 = vunpack.c.h.b16 %v672
    %v1980 = vunpack.c.l.b16 %v673
    %v1981 = vunpack.c.l.b16 %v674
    %v1982 = vunpack.c.h.b16 %v674
    %v1983 = vunpack.c.l.b16 %v675
    %v1984 = vunpack.c.h.b16 %v675
    %v1985 = vunpack.c.l.b16 %v676
    %v1986 = vunpack.c.h.b16 %v676
    %v1987 = vunpack.c.l.b16 %v677
    %v1988 = vunpack.c.l.b16 %v678
    %v1989 = vunpack.c.h.b16 %v678
    %v1990 = vunpack.c.l.b16 %v679
    %v1991 = vunpack.c.h.b16 %v679
    %v1992 = vunpack.c.l.b16 %v680
    %v1993 = vunpack.c.h.b16 %v680
    %v1994 = vunpack.c.l.b16 %v681
    %v1995 = vunpack.c.l.b16 %v682
    %v1996 = vunpack.c.h.b16 %v682
    %v1997 = vunpack.c.l.b16 %v683
    %v1998 = vunpack.c.h.b16 %v683
    %v1999 = vunpack.c.l.b16 %v684
    %v2000 = vunpack.c.h.b16 %v684
    %v2001 = vunpack.c.l.b16 %v685
    %v2002 = vunpack.c.l.b16 %v686
    %v2003 = vunpack.c.h.b16 %v686
    %v2004 = vunpack.c.l.b16 %v687
    %v2005 = vunpack.c.h.b16 %v687
    %v2006 = vunpack.c.l.b16 %v688
    %v2007 = vunpack.c.h.b16 %v688
    %v2008 = vunpack.c.l.b16 %v689
    %v2009 = vunpack.c.l.b16 %v690
    %v2010 = vunpack.c.h.b16 %v690
    %v2011 = vunpack.c.l.b16 %v691
    %v2012 = vunpack.c.h.b16 %v691
    %v2013 = vunpack.c.l.b16 %v692
    %v2014 = vunpack.c.h.b16 %v692
    %v2015 = vunpack.c.l.b16 %v693
    %v2016 = vunpack.c.l.b16 %v694
    %v2017 = vunpack.c.h.b16 %v694
    %v2018 = vunpack.c.l.b16 %v695
    %v2019 = vunpack.c.h.b16 %v695
    %v2020 = vunpack.c.l.b16 %v696
    %v2021 = vunpack.c.h.b16 %v696
    %v2022 = vunpack.c.l.b16 %v697
    %v2023 = vunpack.c.l.b16 %v698
    %v2024 = vunpack.c.h.b16 %v698
    %v2025 = vunpack.c.l.b16 %v699
    %v2026 = vunpack.c.h.b16 %v699
    %v2027 = vunpack.c.l.b16 %v700
    %v2028 = vunpack.c.h.b16 %v700
    %v2029 = vunpack.c.l.b16 %v701
    %v2030 = vunpack.c.l.b16 %v702
    %v2031 = vunpack.c.h.b16 %v702
    %v2032 = vunpack.c.l.b16 %v703
    %v2033 = vunpack.c.h.b16 %v703
    %v2034 = vunpack.c.l.b16 %v704
    %v2035 = vunpack.c.h.b16 %v704
    %v2036 = vunpack.c.l.b16 %v705
    %v2037 = vunpack.c.l.b16 %v706
    %v2038 = vunpack.c.h.b16 %v706
    %v2039 = vunpack.c.l.b16 %v707
    %v2040 = vunpack.c.h.b16 %v707
    %v2041 = vunpack.c.l.b16 %v708
    %v2042 = vunpack.c.h.b16 %v708
    %v2043 = vunpack.c.l.b16 %v709
    %v2044 = vunpack.c.l.b16 %v710
    %v2045 = vunpack.c.h.b16 %v710
    %v2046 = vunpack.c.l.b16 %v711
    %v2047 = vunpack.c.h.b16 %v711
    %v2048 = vunpack.c.l.b16 %v712
    %v2049 = vunpack.c.h.b16 %v712
    %v2050 = vunpack.c.l.b16 %v713
    %v2051 = vunpack.c.l.b16 %v714
    %v2052 = vunpack.c.h.b16 %v714
    %v2053 = vunpack.c.l.b16 %v715
    %v2054 = vunpack.c.h.b16 %v715
    %v2055 = vunpack.c.l.b16 %v716
    %v2056 = vunpack.c.h.b16 %v716
    %v2057 = vunpack.c.l.b16 %v717
    %v2058 = vunpack.c.l.b16 %v718
    %v2059 = vunpack.c.h.b16 %v718
    %v2060 = vunpack.c.l.b16 %v719
    %v2061 = vunpack.c.h.b16 %v719
    %v2062 = vunpack.c.l.b16 %v720
    %v2063 = vunpack.c.h.b16 %v720
    %v2064 = vunpack.c.l.b16 %v721
    %v2065 = vunpack.c.l.b16 %v722
    %v2066 = vunpack.c.h.b16 %v722
    %v2067 = vunpack.c.l.b16 %v723
    %v2068 = vunpack.c.h.b16 %v723
    %v2069 = vunpack.c.l.b16 %v724
    %v2070 = vunpack.c.h.b16 %v724
    %v2071 = vunpack.c.l.b16 %v725
    %v2072 = vunpack.c.l.b16 %v726
    %v2073 = vunpack.c.h.b16 %v726
    %v2074 = vunpack.c.l.b16 %v727
    %v2075 = vunpack.c.h.b16 %v727
    %v2076 = vunpack.c.l.b16 %v728
    %v2077 = vunpack.c.h.b16 %v728
    %v2078 = vunpack.c.l.b16 %v729
    %v2079 = vunpack.c.l.b16 %v730
    %v2080 = vunpack.c.h.b16 %v730
    %v2081 = vunpack.c.l.b16 %v731
    %v2082 = vunpack.c.h.b16 %v731
    %v2083 = vunpack.c.l.b16 %v732
    %v2084 = vunpack.c.h.b16 %v732
    %v2085 = vunpack.c.l.b16 %v733
    %v2086 = vunpack.c.l.b16 %v734
    %v2087 = vunpack.c.h.b16 %v734
    %v2088 = vunpack.c.l.b16 %v735
    %v2089 = vunpack.c.h.b16 %v735
    %v2090 = vunpack.c.l.b16 %v736
    %v2091 = vunpack.c.h.b16 %v736
    %v2092 = vunpack.c.l.b16 %v737
    %v2093 = vunpack.c.l.b16 %v738
    %v2094 = vunpack.c.h.b16 %v738
    %v2095 = vunpack.c.l.b16 %v739
    %v2096 = vunpack.c.h.b16 %v739
    %v2097 = vunpack.c.l.b16 %v740
    %v2098 = vunpack.c.h.b16 %v740
    %v2099 = vunpack.c.l.b16 %v741
    %v2100 = vunpack.c.l.b16 %v742
    %v2101 = vunpack.c.h.b16 %v742
    %v2102 = vunpack.c.l.b16 %v743
    %v2103 = vunpack.c.h.b16 %v743
    %v2104 = vunpack.c.l.b16 %v744
    %v2105 = vunpack.c.h.b16 %v744
    %v2106 = vunpack.c.l.b16 %v745
    %v2107 = vunpack.c.l.b16 %v746
    %v2108 = vunpack.c.h.b16 %v746
    %v2109 = vunpack.c.l.b16 %v747
    %v2110 = vunpack.c.h.b16 %v747
    %v2111 = vunpack.c.l.b16 %v748
    %v2112 = vunpack.c.h.b16 %v748
    %v2113 = vunpack.c.l.b16 %v749
    %v2114 = vunpack.c.l.b16 %v750
    %v2115 = vunpack.c.h.b16 %v750
    %v2116 = vunpack.c.l.b16 %v751
    %v2117 = vunpack.c.h.b16 %v751
    %v2118 = vunpack.c.l.b16 %v752
    %v2119 = vunpack.c.h.b16 %v752
    %v2120 = vunpack.c.l.b16 %v753
    %v2121 = vunpack.c.l.b16 %v754
    %v2122 = vunpack.c.h.b16 %v754
    %v2123 = vunpack.c.l.b16 %v755
    %v2124 = vunpack.c.h.b16 %v755
    %v2125 = vunpack.c.l.b16 %v756
    %v2126 = vunpack.c.h.b16 %v756
    %v2127 = vunpack.c.l.b16 %v757
    %v2128 = vunpack.c.l.b16 %v758
    %v2129 = vunpack.c.h.b16 %v758
    %v2130 = vunpack.c.l.b16 %v759
    %v2131 = vunpack.c.h.b16 %v759
    %v2132 = vunpack.c.l.b16 %v760
    %v2133 = vunpack.c.h.b16 %v760
    %v2134 = vunpack.c.l.b16 %v761
    %v2135 = vunpack.c.l.b16 %v762
    %v2136 = vunpack.c.h.b16 %v762
    %v2137 = vunpack.c.l.b16 %v763
    %v2138 = vunpack.c.h.b16 %v763
    %v2139 = vunpack.c.l.b16 %v764
    %v2140 = vunpack.c.h.b16 %v764
    %v2141 = vunpack.c.l.b16 %v765
    %v2142 = vunpack.c.l.b16 %v766
    %v2143 = vunpack.c.h.b16 %v766
    %v2144 = vunpack.c.l.b16 %v767
    %v2145 = vunpack.c.h.b16 %v767
    %v2146 = vunpack.c.l.b16 %v768
    %v2147 = vunpack.c.h.b16 %v768
    %v2148 = vunpack.c.l.b16 %v769
    %v2149 = vunpack.c.l.b16 %v770
    %v2150 = vunpack.c.h.b16 %v770
    %v2151 = vunpack.c.l.b16 %v771
    %v2152 = vunpack.c.h.b16 %v771
    %v2153 = vunpack.c.l.b16 %v772
    %v2154 = vunpack.c.h.b16 %v772
    %v2155 = vunpack.c.l.b16 %v773
    %v2156 = vunpack.c.l.b16 %v774
    %v2157 = vunpack.c.h.b16 %v774
    %v2158 = vunpack.c.l.b16 %v775
    %v2159 = vunpack.c.h.b16 %v775
    %v2160 = vunpack.c.l.b16 %v776
    %v2161 = vunpack.c.h.b16 %v776
    %v2162 = vunpack.c.l.b16 %v777
    %v2163 = vunpack.c.l.b16 %v778
    %v2164 = vunpack.c.h.b16 %v778
    %v2165 = vunpack.c.l.b16 %v779
    %v2166 = vunpack.c.h.b16 %v779
    %v2167 = vunpack.c.l.b16 %v780
    %v2168 = vunpack.c.h.b16 %v780
    %v2169 = vunpack.c.l.b16 %v781
    %v2170 = vunpack.c.l.b16 %v782
    %v2171 = vunpack.c.h.b16 %v782
    %v2172 = vunpack.c.l.b16 %v783
    %v2173 = vunpack.c.h.b16 %v783
    %v2174 = vunpack.c.l.b16 %v784
    %v2175 = vunpack.c.h.b16 %v784
    %v2176 = vunpack.c.l.b16 %v785
    %v2177 = vunpack.c.l.b16 %v786
    %v2178 = vunpack.c.h.b16 %v786
    %v2179 = vunpack.c.l.b16 %v787
    %v2180 = vunpack.c.h.b16 %v787
    %v2181 = vunpack.c.l.b16 %v788
    %v2182 = vunpack.c.h.b16 %v788
    %v2183 = vunpack.c.l.b16 %v789
    %v2184 = vunpack.c.l.b16 %v790
    %v2185 = vunpack.c.h.b16 %v790
    %v2186 = vunpack.c.l.b16 %v791
    %v2187 = vunpack.c.h.b16 %v791
    %v2188 = vunpack.c.l.b16 %v792
    %v2189 = vunpack.c.h.b16 %v792
    %v2190 = vunpack.c.l.b16 %v793
    %v2191 = vunpack.c.l.b16 %v794
    %v2192 = vunpack.c.h.b16 %v794
    %v2193 = vunpack.c.l.b16 %v795
    %v2194 = vunpack.c.h.b16 %v795
    %v2195 = vunpack.c.l.b16 %v796
    %v2196 = vunpack.c.h.b16 %v796
    %v2197 = vunpack.c.l.b16 %v797
    %v2198 = vunpack.c.l.b16 %v798
    %v2199 = vunpack.c.h.b16 %v798
    %v2200 = vunpack.c.l.b16 %v799
    %v2201 = vunpack.c.h.b16 %v799
    %v2202 = vunpack.c.l.b16 %v800
    %v2203 = vunpack.c.h.b16 %v800
    %v2204 = vunpack.c.l.b16 %v801
    %v2205 = vunpack.c.l.b16 %v802
    %v2206 = vunpack.c.h.b16 %v802
    %v2207 = vunpack.c.l.b16 %v803
    %v2208 = vunpack.c.h.b16 %v803
    %v2209 = vunpack.c.l.b16 %v804
    %v2210 = vunpack.c.h.b16 %v804
    %v2211 = vunpack.c.l.b16 %v805
    %v2212 = vunpack.c.l.b16 %v806
    %v2213 = vunpack.c.h.b16 %v806
    %v2214 = vunpack.c.l.b16 %v807
    %v2215 = vunpack.c.h.b16 %v807
    %v2216 = vunpack.c.l.b16 %v808
    %v2217 = vunpack.c.h.b16 %v808
    %v2218 = vunpack.c.l.b16 %v809
    %v2219 = vunpack.c.l.b16 %v810
    %v2220 = vunpack.c.h.b16 %v810
    %v2221 = vunpack.c.l.b16 %v811
    %v2222 = vunpack.c.h.b16 %v811
    %v2223 = vunpack.c.l.b16 %v812
    %v2224 = vunpack.c.h.b16 %v812
    %v2225 = vunpack.c.l.b16 %v813
    %v2226 = vunpack.c.l.b16 %v814
    %v2227 = vunpack.c.h.b16 %v814
    %v2228 = vunpack.c.l.b16 %v815
    %v2229 = vunpack.c.h.b16 %v815
    %v2230 = vunpack.c.l.b16 %v816
    %v2231 = vunpack.c.h.b16 %v816
    %v2232 = vunpack.c.l.b16 %v817
    %v2233 = vunpack.c.l.b16 %v818
    %v2234 = vunpack.c.h.b16 %v818
    %v2235 = vunpack.c.l.b16 %v819
    %v2236 = vunpack.c.h.b16 %v819
    %v2237 = vunpack.c.l.b16 %v820
    %v2238 = vunpack.c.h.b16 %v820
    %v2239 = vunpack.c.l.b16 %v821
    %v2240 = vunpack.c.l.b16 %v822
    %v2241 = vunpack.c.h.b16 %v822
    %v2242 = vunpack.c.l.b16 %v823
    %v2243 = vunpack.c.h.b16 %v823
    %v2244 = vunpack.c.l.b16 %v824
    %v2245 = vunpack.c.h.b16 %v824
    %v2246 = vunpack.c.l.b16 %v825
    %v2247 = vunpack.c.l.b16 %v826
    %v2248 = vunpack.c.h.b16 %v826
    %v2249 = vunpack.c.l.b16 %v827
    %v2250 = vunpack.c.h.b16 %v827
    %v2251 = vunpack.c.l.b16 %v828
    %v2252 = vunpack.c.h.b16 %v828
    %v2253 = vunpack.c.l.b16 %v829
    %v2254 = vunpack.c.l.b16 %v830
    %v2255 = vunpack.c.h.b16 %v830
    %v2256 = vunpack.c.l.b16 %v831
    %v2257 = vunpack.c.h.b16 %v831
    %v2258 = vunpack.c.l.b16 %v832
    %v2259 = vunpack.c.h.b16 %v832
    %v2260 = vunpack.c.l.b16 %v833
    %v2261 = vunpack.c.l.b16 %v834
    %v2262 = vunpack.c.h.b16 %v834
    %v2263 = vunpack.c.l.b16 %v835
    %v2264 = vunpack.c.h.b16 %v835
    %v2265 = vunpack.c.l.b16 %v836
    %v2266 = vunpack.c.h.b16 %v836
    %v2267 = vunpack.c.l.b16 %v837
    %v2268 = vunpack.c.l.b16 %v838
    %v2269 = vunpack.c.h.b16 %v838
    %v2270 = vunpack.c.l.b16 %v839
    %v2271 = vunpack.c.h.b16 %v839
    %v2272 = vunpack.c.l.b16 %v840
    %v2273 = vunpack.c.h.b16 %v840
    %v2274 = vunpack.c.l.b16 %v841
    %v2275 = vunpack.c.l.b16 %v842
    %v2276 = vunpack.c.h.b16 %v842
    %v2277 = vunpack.c.l.b16 %v843
    %v2278 = vunpack.c.h.b16 %v843
    %v2279 = vunpack.c.l.b16 %v844
    %v2280 = vunpack.c.h.b16 %v844
    %v2281 = vunpack.c.l.b16 %v845
    %v2282 = vunpack.c.l.b16 %v846
    %v2283 = vunpack.c.h.b16 %v846
    %v2284 = vunpack.c.l.b16 %v847
    %v2285 = vunpack.c.h.b16 %v847
    %v2286 = vunpack.c.l.b16 %v848
    %v2287 = vunpack.c.h.b16 %v848
    %v2288 = vunpack.c.l.b16 %v849
    %v2289 = vunpack.c.l.b16 %v850
    %v2290 = vunpack.c.h.b16 %v850
    %v2291 = vunpack.c.l.b16 %v851
    %v2292 = vunpack.c.h.b16 %v851
    %v2293 = vunpack.c.l.b16 %v852
    %v2294 = vunpack.c.h.b16 %v852
    %v2295 = vunpack.c.l.b16 %v853
    %v2296 = vunpack.c.l.b16 %v854
    %v2297 = vunpack.c.h.b16 %v854
    %v2298 = vunpack.c.l.b16 %v855
    %v2299 = vunpack.c.h.b16 %v855
    %v2300 = vunpack.c.l.b16 %v856
    %v2301 = vunpack.c.h.b16 %v856
    %v2302 = vunpack.c.l.b16 %v857
    %v2303 = vpack.c.b16 %v1414, %v1407
    %v2304 = vpack.c.b16 %v1415, %v1408
    %v2305 = vpack.c.b16 %v1416, %v1409
    %v2306 = vpack.c.b16 %v1417, %v1410
    %v2307 = vpack.c.b16 %v1418, %v1411
    %v2308 = vpack.c.b16 %v1419, %v1412
    %v2309 = vpack.c.b16 %v1420, %v1413
    %v2310 = vpack.c.b16 %v1428, %v1421
    %v2311 = vpack.c.b16 %v1429, %v1422
    %v2312 = vpack.c.b16 %v1430, %v1423
    %v2313 = vpack.c.b16 %v1431, %v1424
    %v2314 = vpack.c.b16 %v1432, %v1425
    %v2315 = vpack.c.b16 %v1433, %v1426
    %v2316 = vpack.c.b16 %v1434, %v1427
    %v2317 = vpack.c.b16 %v1442, %v1435
    %v2318 = vpack.c.b16 %v1443, %v1436
    %v2319 = vpack.c.b16 %v1444, %v1437
    %v2320 = vpack.c.b16 %v1445, %v1438
    %v2321 = vpack.c.b16 %v1446, %v1439
    %v2322 = vpack.c.b16 %v1447, %v1440
    %v2323 = vpack.c.b16 %v1448, %v1441
    %v2324 = vpack.c.b16 %v1456, %v1449
    %v2325 = vpack.c.b16 %v1457, %v1450
    %v2326 = vpack.c.b16 %v1458, %v1451
    %v2327 = vpack.c.b16 %v1459, %v1452
    %v2328 = vpack.c.b16 %v1460, %v1453
    %v2329 = vpack.c.b16 %v1461, %v1454
    %v2330 = vpack.c.b16 %v1462, %v1455
    %v2331 = vpack.c.b16 %v1470, %v1463
    %v2332 = vpack.c.b16 %v1471, %v1464
    %v2333 = vpack.c.b16 %v1472, %v1465
    %v2334 = vpack.c.b16 %v1473, %v1466
    %v2335 = vpack.c.b16 %v1474, %v1467
    %v2336 = vpack.c.b16 %v1475, %v1468
    %v2337 = vpack.c.b16 %v1476, %v1469
    %v2338 = vpack.c.b16 %v1484, %v1477
    %v2339 = vpack.c.b16 %v1485, %v1478
    %v2340 = vpack.c.b16 %v1486, %v1479
    %v2341 = vpack.c.b16 %v1487, %v1480
    %v2342 = vpack.c.b16 %v1488, %v1481
    %v2343 = vpack.c.b16 %v1489, %v1482
    %v2344 = vpack.c.b16 %v1490, %v1483
    %v2345 = vpack.c.b16 %v1498, %v1491
    %v2346 = vpack.c.b16 %v1499, %v1492
    %v2347 = vpack.c.b16 %v1500, %v1493
    %v2348 = vpack.c.b16 %v1501, %v1494
    %v2349 = vpack.c.b16 %v1502, %v1495
    %v2350 = vpack.c.b16 %v1503, %v1496
    %v2351 = vpack.c.b16 %v1504, %v1497
    %v2352 = vpack.c.b16 %v1512, %v1505
    %v2353 = vpack.c.b16 %v1513, %v1506
    %v2354 = vpack.c.b16 %v1514, %v1507
    %v2355 = vpack.c.b16 %v1515, %v1508
    %v2356 = vpack.c.b16 %v1516, %v1509
    %v2357 = vpack.c.b16 %v1517, %v1510
    %v2358 = vpack.c.b16 %v1518, %v1511
    %v2359 = vpack.c.b16 %v1526, %v1519
    %v2360 = vpack.c.b16 %v1527, %v1520
    %v2361 = vpack.c.b16 %v1528, %v1521
    %v2362 = vpack.c.b16 %v1529, %v1522
    %v2363 = vpack.c.b16 %v1530, %v1523
    %v2364 = vpack.c.b16 %v1531, %v1524
    %v2365 = vpack.c.b16 %v1532, %v1525
    %v2366 = vpack.c.b16 %v1540, %v1533
    %v2367 = vpack.c.b16 %v1541, %v1534
    %v2368 = vpack.c.b16 %v1542, %v1535
    %v2369 = vpack.c.b16 %v1543, %v1536
    %v2370 = vpack.c.b16 %v1544, %v1537
    %v2371 = vpack.c.b16 %v1545, %v1538
    %v2372 = vpack.c.b16 %v1546, %v1539
    %v2373 = vpack.c.b16 %v1554, %v1547
    %v2374 = vpack.c.b16 %v1555, %v1548
    %v2375 = vpack.c.b16 %v1556, %v1549
    %v2376 = vpack.c.b16 %v1557, %v1550
    %v2377 = vpack.c.b16 %v1558, %v1551
    %v2378 = vpack.c.b16 %v1559, %v1552
    %v2379 = vpack.c.b16 %v1560, %v1553
    %v2380 = vpack.c.b16 %v1568, %v1561
    %v2381 = vpack.c.b16 %v1569, %v1562
    %v2382 = vpack.c.b16 %v1570, %v1563
    %v2383 = vpack.c.b16 %v1571, %v1564
    %v2384 = vpack.c.b16 %v1572, %v1565
    %v2385 = vpack.c.b16 %v1573, %v1566
    %v2386 = vpack.c.b16 %v1574, %v1567
    %v2387 = vpack.c.b16 %v1582, %v1575
    %v2388 = vpack.c.b16 %v1583, %v1576
    %v2389 = vpack.c.b16 %v1584, %v1577
    %v2390 = vpack.c.b16 %v1585, %v1578
    %v2391 = vpack.c.b16 %v1586, %v1579
    %v2392 = vpack.c.b16 %v1587, %v1580
    %v2393 = vpack.c.b16 %v1588, %v1581
    %v2394 = vpack.c.b16 %v1596, %v1589
    %v2395 = vpack.c.b16 %v1597, %v1590
    %v2396 = vpack.c.b16 %v1598, %v1591
    %v2397 = vpack.c.b16 %v1599, %v1592
    %v2398 = vpack.c.b16 %v1600, %v1593
    %v2399 = vpack.c.b16 %v1601, %v1594
    %v2400 = vpack.c.b16 %v1602, %v1595
    %v2401 = vpack.c.b16 %v1610, %v1603
    %v2402 = vpack.c.b16 %v1611, %v1604
    %v2403 = vpack.c.b16 %v1612, %v1605
    %v2404 = vpack.c.b16 %v1613, %v1606
    %v2405 = vpack.c.b16 %v1614, %v1607
    %v2406 = vpack.c.b16 %v1615, %v1608
    %v2407 = vpack.c.b16 %v1616, %v1609
    %v2408 = vpack.c.b16 %v1624, %v1617
    %v2409 = vpack.c.b16 %v1625, %v1618
    %v2410 = vpack.c.b16 %v1626, %v1619
    %v2411 = vpack.c.b16 %v1627, %v1620
    %v2412 = vpack.c.b16 %v1628, %v1621
    %v2413 = vpack.c.b16 %v1629, %v1622
    %v2414 = vpack.c.b16 %v1630, %v1623
    %v2415 = vpack.c.b16 %v1638, %v1631
    %v2416 = vpack.c.b16 %v1639, %v1632
    %v2417 = vpack.c.b16 %v1640, %v1633
    %v2418 = vpack.c.b16 %v1641, %v1634
    %v2419 = vpack.c.b16 %v1642, %v1635
    %v2420 = vpack.c.b16 %v1643, %v1636
    %v2421 = vpack.c.b16 %v1644, %v1637
    %v2422 = vpack.c.b16 %v1652, %v1645
    %v2423 = vpack.c.b16 %v1653, %v1646
    %v2424 = vpack.c.b16 %v1654, %v1647
    %v2425 = vpack.c.b16 %v1655, %v1648
    %v2426 = vpack.c.b16 %v1656, %v1649
    %v2427 = vpack.c.b16 %v1657, %v1650
    %v2428 = vpack.c.b16 %v1658, %v1651
    %v2429 = vpack.c.b16 %v1666, %v1659
    %v2430 = vpack.c.b16 %v1667, %v1660
    %v2431 = vpack.c.b16 %v1668, %v1661
    %v2432 = vpack.c.b16 %v1669, %v1662
    %v2433 = vpack.c.b16 %v1670, %v1663
    %v2434 = vpack.c.b16 %v1671, %v1664
    %v2435 = vpack.c.b16 %v1672, %v1665
    %v2436 = vpack.c.b16 %v1680, %v1673
    %v2437 = vpack.c.b16 %v1681, %v1674
    %v2438 = vpack.c.b16 %v1682, %v1675
    %v2439 = vpack.c.b16 %v1683, %v1676
    %v2440 = vpack.c.b16 %v1684, %v1677
    %v2441 = vpack.c.b16 %v1685, %v1678
    %v2442 = vpack.c.b16 %v1686, %v1679
    %v2443 = vpack.c.b16 %v1694, %v1687
    %v2444 = vpack.c.b16 %v1695, %v1688
    %v2445 = vpack.c.b16 %v1696, %v1689
    %v2446 = vpack.c.b16 %v1697, %v1690
    %v2447 = vpack.c.b16 %v1698, %v1691
    %v2448 = vpack.c.b16 %v1699, %v1692
    %v2449 = vpack.c.b16 %v1700, %v1693
    %v2450 = vpack.c.b16 %v1708, %v1701
    %v2451 = vpack.c.b16 %v1709, %v1702
    %v2452 = vpack.c.b16 %v1710, %v1703
    %v2453 = vpack.c.b16 %v1711, %v1704
    %v2454 = vpack.c.b16 %v1712, %v1705
    %v2455 = vpack.c.b16 %v1713, %v1706
    %v2456 = vpack.c.b16 %v1714, %v1707
    %v2457 = vpack.c.b16 %v1722, %v1715
    %v2458 = vpack.c.b16 %v1723, %v1716
    %v2459 = vpack.c.b16 %v1724, %v1717
    %v2460 = vpack.c.b16 %v1725, %v1718
    %v2461 = vpack.c.b16 %v1726, %v1719
    %v2462 = vpack.c.b16 %v1727, %v1720
    %v2463 = vpack.c.b16 %v1728, %v1721
    %v2464 = vpack.c.b16 %v1736, %v1729
    %v2465 = vpack.c.b16 %v1737, %v1730
    %v2466 = vpack.c.b16 %v1738, %v1731
    %v2467 = vpack.c.b16 %v1739, %v1732
    %v2468 = vpack.c.b16 %v1740, %v1733
    %v2469 = vpack.c.b16 %v1741, %v1734
    %v2470 = vpack.c.b16 %v1742, %v1735
    %v2471 = vpack.c.b16 %v1750, %v1743
    %v2472 = vpack.c.b16 %v1751, %v1744
    %v2473 = vpack.c.b16 %v1752, %v1745
    %v2474 = vpack.c.b16 %v1753, %v1746
    %v2475 = vpack.c.b16 %v1754, %v1747
    %v2476 = vpack.c.b16 %v1755, %v1748
    %v2477 = vpack.c.b16 %v1756, %v1749
    %v2478 = vpack.c.b16 %v1764, %v1757
    %v2479 = vpack.c.b16 %v1765, %v1758
    %v2480 = vpack.c.b16 %v1766, %v1759
    %v2481 = vpack.c.b16 %v1767, %v1760
    %v2482 = vpack.c.b16 %v1768, %v1761
    %v2483 = vpack.c.b16 %v1769, %v1762
    %v2484 = vpack.c.b16 %v1770, %v1763
    %v2485 = vpack.c.b16 %v1778, %v1771
    %v2486 = vpack.c.b16 %v1779, %v1772
    %v2487 = vpack.c.b16 %v1780, %v1773
    %v2488 = vpack.c.b16 %v1781, %v1774
    %v2489 = vpack.c.b16 %v1782, %v1775
    %v2490 = vpack.c.b16 %v1783, %v1776
    %v2491 = vpack.c.b16 %v1784, %v1777
    %v2492 = vpack.c.b16 %v1792, %v1785
    %v2493 = vpack.c.b16 %v1793, %v1786
    %v2494 = vpack.c.b16 %v1794, %v1787
    %v2495 = vpack.c.b16 %v1795, %v1788
    %v2496 = vpack.c.b16 %v1796, %v1789
    %v2497 = vpack.c.b16 %v1797, %v1790
    %v2498 = vpack.c.b16 %v1798, %v1791
    %v2499 = vpack.c.b16 %v1806, %v1799
    %v2500 = vpack.c.b16 %v1807, %v1800
    %v2501 = vpack.c.b16 %v1808, %v1801
    %v2502 = vpack.c.b16 %v1809, %v1802
    %v2503 = vpack.c.b16 %v1810, %v1803
    %v2504 = vpack.c.b16 %v1811, %v1804
    %v2505 = vpack.c.b16 %v1812, %v1805
    %v2506 = vpack.c.b16 %v1820, %v1813
    %v2507 = vpack.c.b16 %v1821, %v1814
    %v2508 = vpack.c.b16 %v1822, %v1815
    %v2509 = vpack.c.b16 %v1823, %v1816
    %v2510 = vpack.c.b16 %v1824, %v1817
    %v2511 = vpack.c.b16 %v1825, %v1818
    %v2512 = vpack.c.b16 %v1826, %v1819
    %v2513 = vpack.c.b16 %v1834, %v1827
    %v2514 = vpack.c.b16 %v1835, %v1828
    %v2515 = vpack.c.b16 %v1836, %v1829
    %v2516 = vpack.c.b16 %v1837, %v1830
    %v2517 = vpack.c.b16 %v1838, %v1831
    %v2518 = vpack.c.b16 %v1839, %v1832
    %v2519 = vpack.c.b16 %v1840, %v1833
    %v2520 = vpack.c.b16 %v1848, %v1841
    %v2521 = vpack.c.b16 %v1849, %v1842
    %v2522 = vpack.c.b16 %v1850, %v1843
    %v2523 = vpack.c.b16 %v1851, %v1844
    %v2524 = vpack.c.b16 %v1852, %v1845
    %v2525 = vpack.c.b16 %v1853, %v1846
    %v2526 = vpack.c.b16 %v1854, %v1847
    %v2527 = vpack.c.b16 %v1862, %v1855
    %v2528 = vpack.c.b16 %v1863, %v1856
    %v2529 = vpack.c.b16 %v1864, %v1857
    %v2530 = vpack.c.b16 %v1865, %v1858
    %v2531 = vpack.c.b16 %v1866, %v1859
    %v2532 = vpack.c.b16 %v1867, %v1860
    %v2533 = vpack.c.b16 %v1868, %v1861
    %v2534 = vpack.c.b16 %v1876, %v1869
    %v2535 = vpack.c.b16 %v1877, %v1870
    %v2536 = vpack.c.b16 %v1878, %v1871
    %v2537 = vpack.c.b16 %v1879, %v1872
    %v2538 = vpack.c.b16 %v1880, %v1873
    %v2539 = vpack.c.b16 %v1881, %v1874
    %v2540 = vpack.c.b16 %v1882, %v1875
    %v2541 = vpack.c.b16 %v1890, %v1883
    %v2542 = vpack.c.b16 %v1891, %v1884
    %v2543 = vpack.c.b16 %v1892, %v1885
    %v2544 = vpack.c.b16 %v1893, %v1886
    %v2545 = vpack.c.b16 %v1894, %v1887
    %v2546 = vpack.c.b16 %v1895, %v1888
    %v2547 = vpack.c.b16 %v1896, %v1889
    %v2548 = vpack.c.b16 %v1904, %v1897
    %v2549 = vpack.c.b16 %v1905, %v1898
    %v2550 = vpack.c.b16 %v1906, %v1899
    %v2551 = vpack.c.b16 %v1907, %v1900
    %v2552 = vpack.c.b16 %v1908, %v1901
    %v2553 = vpack.c.b16 %v1909, %v1902
    %v2554 = vpack.c.b16 %v1910, %v1903
    %v2555 = vpack.c.b16 %v1918, %v1911
    %v2556 = vpack.c.b16 %v1919, %v1912
    %v2557 = vpack.c.b16 %v1920, %v1913
    %v2558 = vpack.c.b16 %v1921, %v1914
    %v2559 = vpack.c.b16 %v1922, %v1915
    %v2560 = vpack.c.b16 %v1923, %v1916
    %v2561 = vpack.c.b16 %v1924, %v1917
    %v2562 = vpack.c.b16 %v1932, %v1925
    %v2563 = vpack.c.b16 %v1933, %v1926
    %v2564 = vpack.c.b16 %v1934, %v1927
    %v2565 = vpack.c.b16 %v1935, %v1928
    %v2566 = vpack.c.b16 %v1936, %v1929
    %v2567 = vpack.c.b16 %v1937, %v1930
    %v2568 = vpack.c.b16 %v1938, %v1931
    %v2569 = vpack.c.b16 %v1946, %v1939
    %v2570 = vpack.c.b16 %v1947, %v1940
    %v2571 = vpack.c.b16 %v1948, %v1941
    %v2572 = vpack.c.b16 %v1949, %v1942
    %v2573 = vpack.c.b16 %v1950, %v1943
    %v2574 = vpack.c.b16 %v1951, %v1944
    %v2575 = vpack.c.b16 %v1952, %v1945
    %v2576 = vpack.c.b16 %v1960, %v1953
    %v2577 = vpack.c.b16 %v1961, %v1954
    %v2578 = vpack.c.b16 %v1962, %v1955
    %v2579 = vpack.c.b16 %v1963, %v1956
    %v2580 = vpack.c.b16 %v1964, %v1957
    %v2581 = vpack.c.b16 %v1965, %v1958
    %v2582 = vpack.c.b16 %v1966, %v1959
    %v2583 = vpack.c.b16 %v1974, %v1967
    %v2584 = vpack.c.b16 %v1975, %v1968
    %v2585 = vpack.c.b16 %v1976, %v1969
    %v2586 = vpack.c.b16 %v1977, %v1970
    %v2587 = vpack.c.b16 %v1978, %v1971
    %v2588 = vpack.c.b16 %v1979, %v1972
    %v2589 = vpack.c.b16 %v1980, %v1973
    %v2590 = vpack.c.b16 %v1988, %v1981
    %v2591 = vpack.c.b16 %v1989, %v1982
    %v2592 = vpack.c.b16 %v1990, %v1983
    %v2593 = vpack.c.b16 %v1991, %v1984
    %v2594 = vpack.c.b16 %v1992, %v1985
    %v2595 = vpack.c.b16 %v1993, %v1986
    %v2596 = vpack.c.b16 %v1994, %v1987
    %v2597 = vpack.c.b16 %v2002, %v1995
    %v2598 = vpack.c.b16 %v2003, %v1996
    %v2599 = vpack.c.b16 %v2004, %v1997
    %v2600 = vpack.c.b16 %v2005, %v1998
    %v2601 = vpack.c.b16 %v2006, %v1999
    %v2602 = vpack.c.b16 %v2007, %v2000
    %v2603 = vpack.c.b16 %v2008, %v2001
    %v2604 = vpack.c.b16 %v2016, %v2009
    %v2605 = vpack.c.b16 %v2017, %v2010
    %v2606 = vpack.c.b16 %v2018, %v2011
    %v2607 = vpack.c.b16 %v2019, %v2012
    %v2608 = vpack.c.b16 %v2020, %v2013
    %v2609 = vpack.c.b16 %v2021, %v2014
    %v2610 = vpack.c.b16 %v2022, %v2015
    %v2611 = vpack.c.b16 %v2030, %v2023
    %v2612 = vpack.c.b16 %v2031, %v2024
    %v2613 = vpack.c.b16 %v2032, %v2025
    %v2614 = vpack.c.b16 %v2033, %v2026
    %v2615 = vpack.c.b16 %v2034, %v2027
    %v2616 = vpack.c.b16 %v2035, %v2028
    %v2617 = vpack.c.b16 %v2036, %v2029
    %v2618 = vpack.c.b16 %v2044, %v2037
    %v2619 = vpack.c.b16 %v2045, %v2038
    %v2620 = vpack.c.b16 %v2046, %v2039
    %v2621 = vpack.c.b16 %v2047, %v2040
    %v2622 = vpack.c.b16 %v2048, %v2041
    %v2623 = vpack.c.b16 %v2049, %v2042
    %v2624 = vpack.c.b16 %v2050, %v2043
    %v2625 = vpack.c.b16 %v2058, %v2051
    %v2626 = vpack.c.b16 %v2059, %v2052
    %v2627 = vpack.c.b16 %v2060, %v2053
    %v2628 = vpack.c.b16 %v2061, %v2054
    %v2629 = vpack.c.b16 %v2062, %v2055
    %v2630 = vpack.c.b16 %v2063, %v2056
    %v2631 = vpack.c.b16 %v2064, %v2057
    %v2632 = vpack.c.b16 %v2072, %v2065
    %v2633 = vpack.c.b16 %v2073, %v2066
    %v2634 = vpack.c.b16 %v2074, %v2067
    %v2635 = vpack.c.b16 %v2075, %v2068
    %v2636 = vpack.c.b16 %v2076, %v2069
    %v2637 = vpack.c.b16 %v2077, %v2070
    %v2638 = vpack.c.b16 %v2078, %v2071
    %v2639 = vpack.c.b16 %v2086, %v2079
    %v2640 = vpack.c.b16 %v2087, %v2080
    %v2641 = vpack.c.b16 %v2088, %v2081
    %v2642 = vpack.c.b16 %v2089, %v2082
    %v2643 = vpack.c.b16 %v2090, %v2083
    %v2644 = vpack.c.b16 %v2091, %v2084
    %v2645 = vpack.c.b16 %v2092, %v2085
    %v2646 = vpack.c.b16 %v2100, %v2093
    %v2647 = vpack.c.b16 %v2101, %v2094
    %v2648 = vpack.c.b16 %v2102, %v2095
    %v2649 = vpack.c.b16 %v2103, %v2096
    %v2650 = vpack.c.b16 %v2104, %v2097
    %v2651 = vpack.c.b16 %v2105, %v2098
    %v2652 = vpack.c.b16 %v2106, %v2099
    %v2653 = vpack.c.b16 %v2114, %v2107
    %v2654 = vpack.c.b16 %v2115, %v2108
    %v2655 = vpack.c.b16 %v2116, %v2109
    %v2656 = vpack.c.b16 %v2117, %v2110
    %v2657 = vpack.c.b16 %v2118, %v2111
    %v2658 = vpack.c.b16 %v2119, %v2112
    %v2659 = vpack.c.b16 %v2120, %v2113
    %v2660 = vpack.c.b16 %v2128, %v2121
    %v2661 = vpack.c.b16 %v2129, %v2122
    %v2662 = vpack.c.b16 %v2130, %v2123
    %v2663 = vpack.c.b16 %v2131, %v2124
    %v2664 = vpack.c.b16 %v2132, %v2125
    %v2665 = vpack.c.b16 %v2133, %v2126
    %v2666 = vpack.c.b16 %v2134, %v2127
    %v2667 = vpack.c.b16 %v2142, %v2135
    %v2668 = vpack.c.b16 %v2143, %v2136
    %v2669 = vpack.c.b16 %v2144, %v2137
    %v2670 = vpack.c.b16 %v2145, %v2138
    %v2671 = vpack.c.b16 %v2146, %v2139
    %v2672 = vpack.c.b16 %v2147, %v2140
    %v2673 = vpack.c.b16 %v2148, %v2141
    %v2674 = vpack.c.b16 %v2156, %v2149
    %v2675 = vpack.c.b16 %v2157, %v2150
    %v2676 = vpack.c.b16 %v2158, %v2151
    %v2677 = vpack.c.b16 %v2159, %v2152
    %v2678 = vpack.c.b16 %v2160, %v2153
    %v2679 = vpack.c.b16 %v2161, %v2154
    %v2680 = vpack.c.b16 %v2162, %v2155
    %v2681 = vpack.c.b16 %v2170, %v2163
    %v2682 = vpack.c.b16 %v2171, %v2164
    %v2683 = vpack.c.b16 %v2172, %v2165
    %v2684 = vpack.c.b16 %v2173, %v2166
    %v2685 = vpack.c.b16 %v2174, %v2167
    %v2686 = vpack.c.b16 %v2175, %v2168
    %v2687 = vpack.c.b16 %v2176, %v2169
    %v2688 = vpack.c.b16 %v2184, %v2177
    %v2689 = vpack.c.b16 %v2185, %v2178
    %v2690 = vpack.c.b16 %v2186, %v2179
    %v2691 = vpack.c.b16 %v2187, %v2180
    %v2692 = vpack.c.b16 %v2188, %v2181
    %v2693 = vpack.c.b16 %v2189, %v2182
    %v2694 = vpack.c.b16 %v2190, %v2183
    %v2695 = vpack.c.b16 %v2198, %v2191
    %v2696 = vpack.c.b16 %v2199, %v2192
    %v2697 = vpack.c.b16 %v2200, %v2193
    %v2698 = vpack.c.b16 %v2201, %v2194
    %v2699 = vpack.c.b16 %v2202, %v2195
    %v2700 = vpack.c.b16 %v2203, %v2196
    %v2701 = vpack.c.b16 %v2204, %v2197
    %v2702 = vpack.c.b16 %v2212, %v2205
    %v2703 = vpack.c.b16 %v2213, %v2206
    %v2704 = vpack.c.b16 %v2214, %v2207
    %v2705 = vpack.c.b16 %v2215, %v2208
    %v2706 = vpack.c.b16 %v2216, %v2209
    %v2707 = vpack.c.b16 %v2217, %v2210
    %v2708 = vpack.c.b16 %v2218, %v2211
    %v2709 = vpack.c.b16 %v2226, %v2219
    %v2710 = vpack.c.b16 %v2227, %v2220
    %v2711 = vpack.c.b16 %v2228, %v2221
    %v2712 = vpack.c.b16 %v2229, %v2222
    %v2713 = vpack.c.b16 %v2230, %v2223
    %v2714 = vpack.c.b16 %v2231, %v2224
    %v2715 = vpack.c.b16 %v2232, %v2225
    %v2716 = vpack.c.b16 %v2240, %v2233
    %v2717 = vpack.c.b16 %v2241, %v2234
    %v2718 = vpack.c.b16 %v2242, %v2235
    %v2719 = vpack.c.b16 %v2243, %v2236
    %v2720 = vpack.c.b16 %v2244, %v2237
    %v2721 = vpack.c.b16 %v2245, %v2238
    %v2722 = vpack.c.b16 %v2246, %v2239
    %v2723 = vpack.c.b16 %v2254, %v2247
    %v2724 = vpack.c.b16 %v2255, %v2248
    %v2725 = vpack.c.b16 %v2256, %v2249
    %v2726 = vpack.c.b16 %v2257, %v2250
    %v2727 = vpack.c.b16 %v2258, %v2251
    %v2728 = vpack.c.b16 %v2259, %v2252
    %v2729 = vpack.c.b16 %v2260, %v2253
    %v2730 = vpack.c.b16 %v2268, %v2261
    %v2731 = vpack.c.b16 %v2269, %v2262
    %v2732 = vpack.c.b16 %v2270, %v2263
    %v2733 = vpack.c.b16 %v2271, %v2264
    %v2734 = vpack.c.b16 %v2272, %v2265
    %v2735 = vpack.c.b16 %v2273, %v2266
    %v2736 = vpack.c.b16 %v2274, %v2267
    %v2737 = vpack.c.b16 %v2282, %v2275
    %v2738 = vpack.c.b16 %v2283, %v2276
    %v2739 = vpack.c.b16 %v2284, %v2277
    %v2740 = vpack.c.b16 %v2285, %v2278
    %v2741 = vpack.c.b16 %v2286, %v2279
    %v2742 = vpack.c.b16 %v2287, %v2280
    %v2743 = vpack.c.b16 %v2288, %v2281
    %v2744 = vpack.c.b16 %v2296, %v2289
    %v2745 = vpack.c.b16 %v2297, %v2290
    %v2746 = vpack.c.b16 %v2298, %v2291
    %v2747 = vpack.c.b16 %v2299, %v2292
    %v2748 = vpack.c.b16 %v2300, %v2293
    %v2749 = vpack.c.b16 %v2301, %v2294
    %v2750 = vpack.c.b16 %v2302, %v2295
    %3199 = vmatprep.subr.bf16.mxu0 %v2353
    %3200 = vmatpush1.bf16.msra.mxu0 %v2352
    %3201 = vmatprep.subr.bf16.mxu0 %v2346
    %3202 = vmatpush1.bf16.msra.mxu0 %v2345
    %3203 = vmatprep.subr.bf16.mxu0 %v2339
    %3204 = vmatpush1.bf16.msra.mxu0 %v2338
    %3205 = vmatprep.subr.bf16.mxu0 %v2332
    %3206 = vmatpush1.bf16.msra.mxu0 %v2331
    %3207 = vmatprep.subr.bf16.mxu0 %v2325
    %3208 = vmatpush1.bf16.msra.mxu0 %v2324
    %3209 = vmatprep.subr.bf16.mxu0 %v2318
    %3210 = vmatpush1.bf16.msra.mxu0 %v2317
    %3211 = vmatprep.subr.bf16.mxu0 %v2311
    %3212 = vmatpush1.bf16.msra.mxu0 %v2310
    %3213 = vmatprep.subr.bf16.mxu0 %v2304
    %3214 = vmatpush1.bf16.msra.mxu0 %v2303
    %3215 = vmatprep.subr.bf16.mxu0 %v2409
    %3216 = vmatpush2.bf16.msra.mxu0 %v2408
    %3217 = vmatprep.subr.bf16.mxu0 %v2402
    %3218 = vmatpush2.bf16.msra.mxu0 %v2401
    %3219 = vmatprep.subr.bf16.mxu0 %v2395
    %3220 = vmatpush2.bf16.msra.mxu0 %v2394
    %3221 = vmatprep.subr.bf16.mxu0 %v2388
    %3222 = vmatpush2.bf16.msra.mxu0 %v2387
    %3223 = vmatprep.subr.bf16.mxu0 %v2381
    %3224 = vmatpush2.bf16.msra.mxu0 %v2380
    %3225 = vmatprep.subr.bf16.mxu0 %v2374
    %3226 = vmatpush2.bf16.msra.mxu0 %v2373
    %3227 = vmatprep.subr.bf16.mxu0 %v2367
    %3228 = vmatpush2.bf16.msra.mxu0 %v2366
    %3229 = vmatprep.subr.bf16.mxu0 %v2360
    %3230 = vmatpush2.bf16.msra.mxu0 %v2359
    %3231 = vmatprep.mubr.bf16.mxu0 %v339
    %3232 = vmatmul.mubr.bf16.gmra.mxu0 %v338
    %v3233 = vpop.f32.mrf.mxu0
    %v3234 = vadd.f32 %v863, %v3233
    %v3235 = vpop.f32.mrf.mxu0
    %v3236 = vadd.f32 %v867, %v3235
    %v3237 = vpop.f32.mrf.mxu0
    %v3238 = vpop.f32.mrf.mxu0
    %3239 = vdwg.mxu0
    %3240 = vmatprep.subr.bf16.mxu0 %v2465
    %3241 = vmatpush1.bf16.msra.mxu0 %v2464
    %3242 = vmatprep.subr.bf16.mxu0 %v2458
    %3243 = vmatpush1.bf16.msra.mxu0 %v2457
    %3244 = vmatprep.subr.bf16.mxu0 %v2451
    %3245 = vmatpush1.bf16.msra.mxu0 %v2450
    %3246 = vmatprep.subr.bf16.mxu0 %v2444
    %3247 = vmatpush1.bf16.msra.mxu0 %v2443
    %3248 = vmatprep.subr.bf16.mxu0 %v2437
    %3249 = vmatpush1.bf16.msra.mxu0 %v2436
    %3250 = vmatprep.subr.bf16.mxu0 %v2430
    %3251 = vmatpush1.bf16.msra.mxu0 %v2429
    %3252 = vmatprep.subr.bf16.mxu0 %v2423
    %3253 = vmatpush1.bf16.msra.mxu0 %v2422
    %3254 = vmatprep.subr.bf16.mxu0 %v2416
    %3255 = vmatpush1.bf16.msra.mxu0 %v2415
    %3256 = vmatprep.subr.bf16.mxu0 %v2521
    %3257 = vmatpush2.bf16.msra.mxu0 %v2520
    %3258 = vmatprep.subr.bf16.mxu0 %v2514
    %3259 = vmatpush2.bf16.msra.mxu0 %v2513
    %3260 = vmatprep.subr.bf16.mxu0 %v2507
    %3261 = vmatpush2.bf16.msra.mxu0 %v2506
    %3262 = vmatprep.subr.bf16.mxu0 %v2500
    %3263 = vmatpush2.bf16.msra.mxu0 %v2499
    %3264 = vmatprep.subr.bf16.mxu0 %v2493
    %3265 = vmatpush2.bf16.msra.mxu0 %v2492
    %3266 = vmatprep.subr.bf16.mxu0 %v2486
    %3267 = vmatpush2.bf16.msra.mxu0 %v2485
    %3268 = vmatprep.subr.bf16.mxu0 %v2479
    %3269 = vmatpush2.bf16.msra.mxu0 %v2478
    %3270 = vmatprep.subr.bf16.mxu0 %v2472
    %3271 = vmatpush2.bf16.msra.mxu0 %v2471
    %3272 = vmatprep.mubr.bf16.mxu0 %v341
    %3273 = vmatmul.mubr.bf16.gmra.mxu0 %v340
    %v3274 = vpop.f32.mrf.mxu0
    %v3275 = vadd.f32 %v3234, %v3274
    %v3276 = vpop.f32.mrf.mxu0
    %v3277 = vadd.f32 %v3236, %v3276
    %v3278 = vpop.f32.mrf.mxu0
    %v3279 = vpop.f32.mrf.mxu0
    %3280 = vdwg.mxu0
    %3281 = vmatprep.subr.bf16.mxu0 %v2577
    %3282 = vmatpush1.bf16.msra.mxu0 %v2576
    %3283 = vmatprep.subr.bf16.mxu0 %v2570
    %3284 = vmatpush1.bf16.msra.mxu0 %v2569
    %3285 = vmatprep.subr.bf16.mxu0 %v2563
    %3286 = vmatpush1.bf16.msra.mxu0 %v2562
    %3287 = vmatprep.subr.bf16.mxu0 %v2556
    %3288 = vmatpush1.bf16.msra.mxu0 %v2555
    %3289 = vmatprep.subr.bf16.mxu0 %v2549
    %3290 = vmatpush1.bf16.msra.mxu0 %v2548
    %3291 = vmatprep.subr.bf16.mxu0 %v2542
    %3292 = vmatpush1.bf16.msra.mxu0 %v2541
    %3293 = vmatprep.subr.bf16.mxu0 %v2535
    %3294 = vmatpush1.bf16.msra.mxu0 %v2534
    %3295 = vmatprep.subr.bf16.mxu0 %v2528
    %3296 = vmatpush1.bf16.msra.mxu0 %v2527
    %3297 = vmatprep.subr.bf16.mxu0 %v2633
    %3298 = vmatpush2.bf16.msra.mxu0 %v2632
    %3299 = vmatprep.subr.bf16.mxu0 %v2626
    %3300 = vmatpush2.bf16.msra.mxu0 %v2625
    %3301 = vmatprep.subr.bf16.mxu0 %v2619
    %3302 = vmatpush2.bf16.msra.mxu0 %v2618
    %3303 = vmatprep.subr.bf16.mxu0 %v2612
    %3304 = vmatpush2.bf16.msra.mxu0 %v2611
    %3305 = vmatprep.subr.bf16.mxu0 %v2605
    %3306 = vmatpush2.bf16.msra.mxu0 %v2604
    %3307 = vmatprep.subr.bf16.mxu0 %v2598
    %3308 = vmatpush2.bf16.msra.mxu0 %v2597
    %3309 = vmatprep.subr.bf16.mxu0 %v2591
    %3310 = vmatpush2.bf16.msra.mxu0 %v2590
    %3311 = vmatprep.subr.bf16.mxu0 %v2584
    %3312 = vmatpush2.bf16.msra.mxu0 %v2583
    %3313 = vmatprep.mubr.bf16.mxu0 %v343
    %3314 = vmatmul.mubr.bf16.gmra.mxu0 %v342
    %v3315 = vpop.f32.mrf.mxu0
    %v3316 = vadd.f32 %v3275, %v3315
    %v3317 = vpop.f32.mrf.mxu0
    %v3318 = vadd.f32 %v3277, %v3317
    %v3319 = vpop.f32.mrf.mxu0
    %v3320 = vpop.f32.mrf.mxu0
    %3321 = vdwg.mxu0
    %3322 = vmatprep.subr.bf16.mxu0 %v2689
    %3323 = vmatpush1.bf16.msra.mxu0 %v2688
    %3324 = vmatprep.subr.bf16.mxu0 %v2682
    %3325 = vmatpush1.bf16.msra.mxu0 %v2681
    %3326 = vmatprep.subr.bf16.mxu0 %v2675
    %3327 = vmatpush1.bf16.msra.mxu0 %v2674
    %3328 = vmatprep.subr.bf16.mxu0 %v2668
    %3329 = vmatpush1.bf16.msra.mxu0 %v2667
    %3330 = vmatprep.subr.bf16.mxu0 %v2661
    %3331 = vmatpush1.bf16.msra.mxu0 %v2660
    %3332 = vmatprep.subr.bf16.mxu0 %v2654
    %3333 = vmatpush1.bf16.msra.mxu0 %v2653
    %3334 = vmatprep.subr.bf16.mxu0 %v2647
    %3335 = vmatpush1.bf16.msra.mxu0 %v2646
    %3336 = vmatprep.subr.bf16.mxu0 %v2640
    %3337 = vmatpush1.bf16.msra.mxu0 %v2639
    %3338 = vmatprep.subr.bf16.mxu0 %v2745
    %3339 = vmatpush2.bf16.msra.mxu0 %v2744
    %3340 = vmatprep.subr.bf16.mxu0 %v2738
    %3341 = vmatpush2.bf16.msra.mxu0 %v2737
    %3342 = vmatprep.subr.bf16.mxu0 %v2731
    %3343 = vmatpush2.bf16.msra.mxu0 %v2730
    %3344 = vmatprep.subr.bf16.mxu0 %v2724
    %3345 = vmatpush2.bf16.msra.mxu0 %v2723
    %3346 = vmatprep.subr.bf16.mxu0 %v2717
    %3347 = vmatpush2.bf16.msra.mxu0 %v2716
    %3348 = vmatprep.subr.bf16.mxu0 %v2710
    %3349 = vmatpush2.bf16.msra.mxu0 %v2709
    %3350 = vmatprep.subr.bf16.mxu0 %v2703
    %3351 = vmatpush2.bf16.msra.mxu0 %v2702
    %3352 = vmatprep.subr.bf16.mxu0 %v2696
    %3353 = vmatpush2.bf16.msra.mxu0 %v2695
    %3354 = vmatprep.mubr.bf16.mxu0 %v345
    %3355 = vmatmul.mubr.bf16.gmra.mxu0 %v344
    %v3356 = vpop.f32.mrf.mxu0
    %v3357 = vadd.f32 %v3316, %v3356
    %v3358 = vpop.f32.mrf.mxu0
    %v3359 = vadd.f32 %v3318, %v3358
    %v3360 = vpop.f32.mrf.mxu0
    %v3361 = vpop.f32.mrf.mxu0
    %3362 = vdwg.mxu0
    %3363 = vmatprep.subr.bf16.mxu0 %v2355
    %3364 = vmatpush1.bf16.msra.mxu0 %v2354
    %3365 = vmatprep.subr.bf16.mxu0 %v2348
    %3366 = vmatpush1.bf16.msra.mxu0 %v2347
    %3367 = vmatprep.subr.bf16.mxu0 %v2341
    %3368 = vmatpush1.bf16.msra.mxu0 %v2340
    %3369 = vmatprep.subr.bf16.mxu0 %v2334
    %3370 = vmatpush1.bf16.msra.mxu0 %v2333
    %3371 = vmatprep.subr.bf16.mxu0 %v2327
    %3372 = vmatpush1.bf16.msra.mxu0 %v2326
    %3373 = vmatprep.subr.bf16.mxu0 %v2320
    %3374 = vmatpush1.bf16.msra.mxu0 %v2319
    %3375 = vmatprep.subr.bf16.mxu0 %v2313
    %3376 = vmatpush1.bf16.msra.mxu0 %v2312
    %3377 = vmatprep.subr.bf16.mxu0 %v2306
    %3378 = vmatpush1.bf16.msra.mxu0 %v2305
    %3379 = vmatprep.subr.bf16.mxu0 %v2411
    %3380 = vmatpush2.bf16.msra.mxu0 %v2410
    %3381 = vmatprep.subr.bf16.mxu0 %v2404
    %3382 = vmatpush2.bf16.msra.mxu0 %v2403
    %3383 = vmatprep.subr.bf16.mxu0 %v2397
    %3384 = vmatpush2.bf16.msra.mxu0 %v2396
    %3385 = vmatprep.subr.bf16.mxu0 %v2390
    %3386 = vmatpush2.bf16.msra.mxu0 %v2389
    %3387 = vmatprep.subr.bf16.mxu0 %v2383
    %3388 = vmatpush2.bf16.msra.mxu0 %v2382
    %3389 = vmatprep.subr.bf16.mxu0 %v2376
    %3390 = vmatpush2.bf16.msra.mxu0 %v2375
    %3391 = vmatprep.subr.bf16.mxu0 %v2369
    %3392 = vmatpush2.bf16.msra.mxu0 %v2368
    %3393 = vmatprep.subr.bf16.mxu0 %v2362
    %3394 = vmatpush2.bf16.msra.mxu0 %v2361
    %3395 = vmatprep.mubr.bf16.mxu0 %v339
    %3396 = vmatmul.mubr.bf16.gmra.mxu0 %v338
    %v3397 = vpop.f32.mrf.mxu0
    %v3398 = vadd.f32 %v871, %v3397
    %v3399 = vpop.f32.mrf.mxu0
    %v3400 = vadd.f32 %v875, %v3399
    %v3401 = vpop.f32.mrf.mxu0
    %v3402 = vpop.f32.mrf.mxu0
    %3403 = vdwg.mxu0
    %3404 = vmatprep.subr.bf16.mxu0 %v2467
    %3405 = vmatpush1.bf16.msra.mxu0 %v2466
    %3406 = vmatprep.subr.bf16.mxu0 %v2460
    %3407 = vmatpush1.bf16.msra.mxu0 %v2459
    %3408 = vmatprep.subr.bf16.mxu0 %v2453
    %3409 = vmatpush1.bf16.msra.mxu0 %v2452
    %3410 = vmatprep.subr.bf16.mxu0 %v2446
    %3411 = vmatpush1.bf16.msra.mxu0 %v2445
    %3412 = vmatprep.subr.bf16.mxu0 %v2439
    %3413 = vmatpush1.bf16.msra.mxu0 %v2438
    %3414 = vmatprep.subr.bf16.mxu0 %v2432
    %3415 = vmatpush1.bf16.msra.mxu0 %v2431
    %3416 = vmatprep.subr.bf16.mxu0 %v2425
    %3417 = vmatpush1.bf16.msra.mxu0 %v2424
    %3418 = vmatprep.subr.bf16.mxu0 %v2418
    %3419 = vmatpush1.bf16.msra.mxu0 %v2417
    %3420 = vmatprep.subr.bf16.mxu0 %v2523
    %3421 = vmatpush2.bf16.msra.mxu0 %v2522
    %3422 = vmatprep.subr.bf16.mxu0 %v2516
    %3423 = vmatpush2.bf16.msra.mxu0 %v2515
    %3424 = vmatprep.subr.bf16.mxu0 %v2509
    %3425 = vmatpush2.bf16.msra.mxu0 %v2508
    %3426 = vmatprep.subr.bf16.mxu0 %v2502
    %3427 = vmatpush2.bf16.msra.mxu0 %v2501
    %3428 = vmatprep.subr.bf16.mxu0 %v2495
    %3429 = vmatpush2.bf16.msra.mxu0 %v2494
    %3430 = vmatprep.subr.bf16.mxu0 %v2488
    %3431 = vmatpush2.bf16.msra.mxu0 %v2487
    %3432 = vmatprep.subr.bf16.mxu0 %v2481
    %3433 = vmatpush2.bf16.msra.mxu0 %v2480
    %3434 = vmatprep.subr.bf16.mxu0 %v2474
    %3435 = vmatpush2.bf16.msra.mxu0 %v2473
    %3436 = vmatprep.mubr.bf16.mxu0 %v341
    %3437 = vmatmul.mubr.bf16.gmra.mxu0 %v340
    %v3438 = vpop.f32.mrf.mxu0
    %v3439 = vadd.f32 %v3398, %v3438
    %v3440 = vpop.f32.mrf.mxu0
    %v3441 = vadd.f32 %v3400, %v3440
    %v3442 = vpop.f32.mrf.mxu0
    %v3443 = vpop.f32.mrf.mxu0
    %3444 = vdwg.mxu0
    %3445 = vmatprep.subr.bf16.mxu0 %v2579
    %3446 = vmatpush1.bf16.msra.mxu0 %v2578
    %3447 = vmatprep.subr.bf16.mxu0 %v2572
    %3448 = vmatpush1.bf16.msra.mxu0 %v2571
    %3449 = vmatprep.subr.bf16.mxu0 %v2565
    %3450 = vmatpush1.bf16.msra.mxu0 %v2564
    %3451 = vmatprep.subr.bf16.mxu0 %v2558
    %3452 = vmatpush1.bf16.msra.mxu0 %v2557
    %3453 = vmatprep.subr.bf16.mxu0 %v2551
    %3454 = vmatpush1.bf16.msra.mxu0 %v2550
    %3455 = vmatprep.subr.bf16.mxu0 %v2544
    %3456 = vmatpush1.bf16.msra.mxu0 %v2543
    %3457 = vmatprep.subr.bf16.mxu0 %v2537
    %3458 = vmatpush1.bf16.msra.mxu0 %v2536
    %3459 = vmatprep.subr.bf16.mxu0 %v2530
    %3460 = vmatpush1.bf16.msra.mxu0 %v2529
    %3461 = vmatprep.subr.bf16.mxu0 %v2635
    %3462 = vmatpush2.bf16.msra.mxu0 %v2634
    %3463 = vmatprep.subr.bf16.mxu0 %v2628
    %3464 = vmatpush2.bf16.msra.mxu0 %v2627
    %3465 = vmatprep.subr.bf16.mxu0 %v2621
    %3466 = vmatpush2.bf16.msra.mxu0 %v2620
    %3467 = vmatprep.subr.bf16.mxu0 %v2614
    %3468 = vmatpush2.bf16.msra.mxu0 %v2613
    %3469 = vmatprep.subr.bf16.mxu0 %v2607
    %3470 = vmatpush2.bf16.msra.mxu0 %v2606
    %3471 = vmatprep.subr.bf16.mxu0 %v2600
    %3472 = vmatpush2.bf16.msra.mxu0 %v2599
    %3473 = vmatprep.subr.bf16.mxu0 %v2593
    %3474 = vmatpush2.bf16.msra.mxu0 %v2592
    %3475 = vmatprep.subr.bf16.mxu0 %v2586
    %3476 = vmatpush2.bf16.msra.mxu0 %v2585
    %3477 = vmatprep.mubr.bf16.mxu0 %v343
    %3478 = vmatmul.mubr.bf16.gmra.mxu0 %v342
    %v3479 = vpop.f32.mrf.mxu0
    %v3480 = vadd.f32 %v3439, %v3479
    %v3481 = vpop.f32.mrf.mxu0
    %v3482 = vadd.f32 %v3441, %v3481
    %v3483 = vpop.f32.mrf.mxu0
    %v3484 = vpop.f32.mrf.mxu0
    %3485 = vdwg.mxu0
    %3486 = vmatprep.subr.bf16.mxu0 %v2691
    %3487 = vmatpush1.bf16.msra.mxu0 %v2690
    %3488 = vmatprep.subr.bf16.mxu0 %v2684
    %3489 = vmatpush1.bf16.msra.mxu0 %v2683
    %3490 = vmatprep.subr.bf16.mxu0 %v2677
    %3491 = vmatpush1.bf16.msra.mxu0 %v2676
    %3492 = vmatprep.subr.bf16.mxu0 %v2670
    %3493 = vmatpush1.bf16.msra.mxu0 %v2669
    %3494 = vmatprep.subr.bf16.mxu0 %v2663
    %3495 = vmatpush1.bf16.msra.mxu0 %v2662
    %3496 = vmatprep.subr.bf16.mxu0 %v2656
    %3497 = vmatpush1.bf16.msra.mxu0 %v2655
    %3498 = vmatprep.subr.bf16.mxu0 %v2649
    %3499 = vmatpush1.bf16.msra.mxu0 %v2648
    %3500 = vmatprep.subr.bf16.mxu0 %v2642
    %3501 = vmatpush1.bf16.msra.mxu0 %v2641
    %3502 = vmatprep.subr.bf16.mxu0 %v2747
    %3503 = vmatpush2.bf16.msra.mxu0 %v2746
    %3504 = vmatprep.subr.bf16.mxu0 %v2740
    %3505 = vmatpush2.bf16.msra.mxu0 %v2739
    %3506 = vmatprep.subr.bf16.mxu0 %v2733
    %3507 = vmatpush2.bf16.msra.mxu0 %v2732
    %3508 = vmatprep.subr.bf16.mxu0 %v2726
    %3509 = vmatpush2.bf16.msra.mxu0 %v2725
    %3510 = vmatprep.subr.bf16.mxu0 %v2719
    %3511 = vmatpush2.bf16.msra.mxu0 %v2718
    %3512 = vmatprep.subr.bf16.mxu0 %v2712
    %3513 = vmatpush2.bf16.msra.mxu0 %v2711
    %3514 = vmatprep.subr.bf16.mxu0 %v2705
    %3515 = vmatpush2.bf16.msra.mxu0 %v2704
    %3516 = vmatprep.subr.bf16.mxu0 %v2698
    %3517 = vmatpush2.bf16.msra.mxu0 %v2697
    %3518 = vmatprep.mubr.bf16.mxu0 %v345
    %3519 = vmatmul.mubr.bf16.gmra.mxu0 %v344
    %v3520 = vpop.f32.mrf.mxu0
    %v3521 = vadd.f32 %v3480, %v3520
    %v3522 = vpop.f32.mrf.mxu0
    %v3523 = vadd.f32 %v3482, %v3522
    %v3524 = vpop.f32.mrf.mxu0
    %v3525 = vpop.f32.mrf.mxu0
    %3526 = vdwg.mxu0
    %3527 = vmatprep.subr.bf16.mxu0 %v2357
    %3528 = vmatpush1.bf16.msra.mxu0 %v2356
    %3529 = vmatprep.subr.bf16.mxu0 %v2350
    %3530 = vmatpush1.bf16.msra.mxu0 %v2349
    %3531 = vmatprep.subr.bf16.mxu0 %v2343
    %3532 = vmatpush1.bf16.msra.mxu0 %v2342
    %3533 = vmatprep.subr.bf16.mxu0 %v2336
    %3534 = vmatpush1.bf16.msra.mxu0 %v2335
    %3535 = vmatprep.subr.bf16.mxu0 %v2329
    %3536 = vmatpush1.bf16.msra.mxu0 %v2328
    %3537 = vmatprep.subr.bf16.mxu0 %v2322
    %3538 = vmatpush1.bf16.msra.mxu0 %v2321
    %3539 = vmatprep.subr.bf16.mxu0 %v2315
    %3540 = vmatpush1.bf16.msra.mxu0 %v2314
    %3541 = vmatprep.subr.bf16.mxu0 %v2308
    %3542 = vmatpush1.bf16.msra.mxu0 %v2307
    %3543 = vmatprep.subr.bf16.mxu0 %v2413
    %3544 = vmatpush2.bf16.msra.mxu0 %v2412
    %3545 = vmatprep.subr.bf16.mxu0 %v2406
    %3546 = vmatpush2.bf16.msra.mxu0 %v2405
    %3547 = vmatprep.subr.bf16.mxu0 %v2399
    %3548 = vmatpush2.bf16.msra.mxu0 %v2398
    %3549 = vmatprep.subr.bf16.mxu0 %v2392
    %3550 = vmatpush2.bf16.msra.mxu0 %v2391
    %3551 = vmatprep.subr.bf16.mxu0 %v2385
    %3552 = vmatpush2.bf16.msra.mxu0 %v2384
    %3553 = vmatprep.subr.bf16.mxu0 %v2378
    %3554 = vmatpush2.bf16.msra.mxu0 %v2377
    %3555 = vmatprep.subr.bf16.mxu0 %v2371
    %3556 = vmatpush2.bf16.msra.mxu0 %v2370
    %3557 = vmatprep.subr.bf16.mxu0 %v2364
    %3558 = vmatpush2.bf16.msra.mxu0 %v2363
    %3559 = vmatprep.mubr.bf16.mxu0 %v339
    %3560 = vmatmul.mubr.bf16.gmra.mxu0 %v338
    %v3561 = vpop.f32.mrf.mxu0
    %v3562 = vadd.f32 %v879, %v3561
    %v3563 = vpop.f32.mrf.mxu0
    %v3564 = vadd.f32 %v883, %v3563
    %v3565 = vpop.f32.mrf.mxu0
    %v3566 = vpop.f32.mrf.mxu0
    %3567 = vdwg.mxu0
    %3568 = vmatprep.subr.bf16.mxu0 %v2469
    %3569 = vmatpush1.bf16.msra.mxu0 %v2468
    %3570 = vmatprep.subr.bf16.mxu0 %v2462
    %3571 = vmatpush1.bf16.msra.mxu0 %v2461
    %3572 = vmatprep.subr.bf16.mxu0 %v2455
    %3573 = vmatpush1.bf16.msra.mxu0 %v2454
    %3574 = vmatprep.subr.bf16.mxu0 %v2448
    %3575 = vmatpush1.bf16.msra.mxu0 %v2447
    %3576 = vmatprep.subr.bf16.mxu0 %v2441
    %3577 = vmatpush1.bf16.msra.mxu0 %v2440
    %3578 = vmatprep.subr.bf16.mxu0 %v2434
    %3579 = vmatpush1.bf16.msra.mxu0 %v2433
    %3580 = vmatprep.subr.bf16.mxu0 %v2427
    %3581 = vmatpush1.bf16.msra.mxu0 %v2426
    %3582 = vmatprep.subr.bf16.mxu0 %v2420
    %3583 = vmatpush1.bf16.msra.mxu0 %v2419
    %3584 = vmatprep.subr.bf16.mxu0 %v2525
    %3585 = vmatpush2.bf16.msra.mxu0 %v2524
    %3586 = vmatprep.subr.bf16.mxu0 %v2518
    %3587 = vmatpush2.bf16.msra.mxu0 %v2517
    %3588 = vmatprep.subr.bf16.mxu0 %v2511
    %3589 = vmatpush2.bf16.msra.mxu0 %v2510
    %3590 = vmatprep.subr.bf16.mxu0 %v2504
    %3591 = vmatpush2.bf16.msra.mxu0 %v2503
    %3592 = vmatprep.subr.bf16.mxu0 %v2497
    %3593 = vmatpush2.bf16.msra.mxu0 %v2496
    %3594 = vmatprep.subr.bf16.mxu0 %v2490
    %3595 = vmatpush2.bf16.msra.mxu0 %v2489
    %3596 = vmatprep.subr.bf16.mxu0 %v2483
    %3597 = vmatpush2.bf16.msra.mxu0 %v2482
    %3598 = vmatprep.subr.bf16.mxu0 %v2476
    %3599 = vmatpush2.bf16.msra.mxu0 %v2475
    %3600 = vmatprep.mubr.bf16.mxu0 %v341
    %3601 = vmatmul.mubr.bf16.gmra.mxu0 %v340
    %v3602 = vpop.f32.mrf.mxu0
    %v3603 = vadd.f32 %v3562, %v3602
    %v3604 = vpop.f32.mrf.mxu0
    %v3605 = vadd.f32 %v3564, %v3604
    %v3606 = vpop.f32.mrf.mxu0
    %v3607 = vpop.f32.mrf.mxu0
    %3608 = vdwg.mxu0
    %3609 = vmatprep.subr.bf16.mxu0 %v2581
    %3610 = vmatpush1.bf16.msra.mxu0 %v2580
    %3611 = vmatprep.subr.bf16.mxu0 %v2574
    %3612 = vmatpush1.bf16.msra.mxu0 %v2573
    %3613 = vmatprep.subr.bf16.mxu0 %v2567
    %3614 = vmatpush1.bf16.msra.mxu0 %v2566
    %3615 = vmatprep.subr.bf16.mxu0 %v2560
    %3616 = vmatpush1.bf16.msra.mxu0 %v2559
    %3617 = vmatprep.subr.bf16.mxu0 %v2553
    %3618 = vmatpush1.bf16.msra.mxu0 %v2552
    %3619 = vmatprep.subr.bf16.mxu0 %v2546
    %3620 = vmatpush1.bf16.msra.mxu0 %v2545
    %3621 = vmatprep.subr.bf16.mxu0 %v2539
    %3622 = vmatpush1.bf16.msra.mxu0 %v2538
    %3623 = vmatprep.subr.bf16.mxu0 %v2532
    %3624 = vmatpush1.bf16.msra.mxu0 %v2531
    %3625 = vmatprep.subr.bf16.mxu0 %v2637
    %3626 = vmatpush2.bf16.msra.mxu0 %v2636
    %3627 = vmatprep.subr.bf16.mxu0 %v2630
    %3628 = vmatpush2.bf16.msra.mxu0 %v2629
    %3629 = vmatprep.subr.bf16.mxu0 %v2623
    %3630 = vmatpush2.bf16.msra.mxu0 %v2622
    %3631 = vmatprep.subr.bf16.mxu0 %v2616
    %3632 = vmatpush2.bf16.msra.mxu0 %v2615
    %3633 = vmatprep.subr.bf16.mxu0 %v2609
    %3634 = vmatpush2.bf16.msra.mxu0 %v2608
    %3635 = vmatprep.subr.bf16.mxu0 %v2602
    %3636 = vmatpush2.bf16.msra.mxu0 %v2601
    %3637 = vmatprep.subr.bf16.mxu0 %v2595
    %3638 = vmatpush2.bf16.msra.mxu0 %v2594
    %3639 = vmatprep.subr.bf16.mxu0 %v2588
    %3640 = vmatpush2.bf16.msra.mxu0 %v2587
    %3641 = vmatprep.mubr.bf16.mxu0 %v343
    %3642 = vmatmul.mubr.bf16.gmra.mxu0 %v342
    %v3643 = vpop.f32.mrf.mxu0
    %v3644 = vadd.f32 %v3603, %v3643
    %v3645 = vpop.f32.mrf.mxu0
    %v3646 = vadd.f32 %v3605, %v3645
    %v3647 = vpop.f32.mrf.mxu0
    %v3648 = vpop.f32.mrf.mxu0
    %3649 = vdwg.mxu0
    %3650 = vmatprep.subr.bf16.mxu0 %v2693
    %3651 = vmatpush1.bf16.msra.mxu0 %v2692
    %3652 = vmatprep.subr.bf16.mxu0 %v2686
    %3653 = vmatpush1.bf16.msra.mxu0 %v2685
    %3654 = vmatprep.subr.bf16.mxu0 %v2679
    %3655 = vmatpush1.bf16.msra.mxu0 %v2678
    %3656 = vmatprep.subr.bf16.mxu0 %v2672
    %3657 = vmatpush1.bf16.msra.mxu0 %v2671
    %3658 = vmatprep.subr.bf16.mxu0 %v2665
    %3659 = vmatpush1.bf16.msra.mxu0 %v2664
    %3660 = vmatprep.subr.bf16.mxu0 %v2658
    %3661 = vmatpush1.bf16.msra.mxu0 %v2657
    %3662 = vmatprep.subr.bf16.mxu0 %v2651
    %3663 = vmatpush1.bf16.msra.mxu0 %v2650
    %3664 = vmatprep.subr.bf16.mxu0 %v2644
    %3665 = vmatpush1.bf16.msra.mxu0 %v2643
    %3666 = vmatprep.subr.bf16.mxu0 %v2749
    %3667 = vmatpush2.bf16.msra.mxu0 %v2748
    %3668 = vmatprep.subr.bf16.mxu0 %v2742
    %3669 = vmatpush2.bf16.msra.mxu0 %v2741
    %3670 = vmatprep.subr.bf16.mxu0 %v2735
    %3671 = vmatpush2.bf16.msra.mxu0 %v2734
    %3672 = vmatprep.subr.bf16.mxu0 %v2728
    %3673 = vmatpush2.bf16.msra.mxu0 %v2727
    %3674 = vmatprep.subr.bf16.mxu0 %v2721
    %3675 = vmatpush2.bf16.msra.mxu0 %v2720
    %3676 = vmatprep.subr.bf16.mxu0 %v2714
    %3677 = vmatpush2.bf16.msra.mxu0 %v2713
    %3678 = vmatprep.subr.bf16.mxu0 %v2707
    %3679 = vmatpush2.bf16.msra.mxu0 %v2706
    %3680 = vmatprep.subr.bf16.mxu0 %v2700
    %3681 = vmatpush2.bf16.msra.mxu0 %v2699
    %3682 = vmatprep.mubr.bf16.mxu0 %v345
    %3683 = vmatmul.mubr.bf16.gmra.mxu0 %v344
    %v3684 = vpop.f32.mrf.mxu0
    %v3685 = vadd.f32 %v3644, %v3684
    %v3686 = vpop.f32.mrf.mxu0
    %v3687 = vadd.f32 %v3646, %v3686
    %v3688 = vpop.f32.mrf.mxu0
    %v3689 = vpop.f32.mrf.mxu0
    %3690 = vdwg.mxu0
    %3691 = vmatprep.subr.bf16.mxu0 0
    %3692 = vmatpush1.bf16.msra.mxu0 %v2358
    %3693 = vmatprep.subr.bf16.mxu0 0
    %3694 = vmatpush1.bf16.msra.mxu0 %v2351
    %3695 = vmatprep.subr.bf16.mxu0 0
    %3696 = vmatpush1.bf16.msra.mxu0 %v2344
    %3697 = vmatprep.subr.bf16.mxu0 0
    %3698 = vmatpush1.bf16.msra.mxu0 %v2337
    %3699 = vmatprep.subr.bf16.mxu0 0
    %3700 = vmatpush1.bf16.msra.mxu0 %v2330
    %3701 = vmatprep.subr.bf16.mxu0 0
    %3702 = vmatpush1.bf16.msra.mxu0 %v2323
    %3703 = vmatprep.subr.bf16.mxu0 0
    %3704 = vmatpush1.bf16.msra.mxu0 %v2316
    %3705 = vmatprep.subr.bf16.mxu0 0
    %3706 = vmatpush1.bf16.msra.mxu0 %v2309
    %3707 = vmatprep.subr.bf16.mxu0 0
    %3708 = vmatpush2.bf16.msra.mxu0 %v2414
    %3709 = vmatprep.subr.bf16.mxu0 0
    %3710 = vmatpush2.bf16.msra.mxu0 %v2407
    %3711 = vmatprep.subr.bf16.mxu0 0
    %3712 = vmatpush2.bf16.msra.mxu0 %v2400
    %3713 = vmatprep.subr.bf16.mxu0 0
    %3714 = vmatpush2.bf16.msra.mxu0 %v2393
    %3715 = vmatprep.subr.bf16.mxu0 0
    %3716 = vmatpush2.bf16.msra.mxu0 %v2386
    %3717 = vmatprep.subr.bf16.mxu0 0
    %3718 = vmatpush2.bf16.msra.mxu0 %v2379
    %3719 = vmatprep.subr.bf16.mxu0 0
    %3720 = vmatpush2.bf16.msra.mxu0 %v2372
    %3721 = vmatprep.subr.bf16.mxu0 0
    %3722 = vmatpush2.bf16.msra.mxu0 %v2365
    %3723 = vmatprep.mubr.bf16.mxu0 %v339
    %3724 = vmatmul.mubr.bf16.gmra.mxu0 %v338
    %v3725 = vpop.f32.mrf.mxu0
    %v3726 = vadd.f32 %v887, %v3725
    %v3727 = vpop.f32.mrf.mxu0
    %v3728 = vpop.f32.mrf.mxu0
    %v3729 = vpop.f32.mrf.mxu0
    %3730 = vdwg.mxu0
    %3731 = vmatprep.subr.bf16.mxu0 0
    %3732 = vmatpush1.bf16.msra.mxu0 %v2470
    %3733 = vmatprep.subr.bf16.mxu0 0
    %3734 = vmatpush1.bf16.msra.mxu0 %v2463
    %3735 = vmatprep.subr.bf16.mxu0 0
    %3736 = vmatpush1.bf16.msra.mxu0 %v2456
    %3737 = vmatprep.subr.bf16.mxu0 0
    %3738 = vmatpush1.bf16.msra.mxu0 %v2449
    %3739 = vmatprep.subr.bf16.mxu0 0
    %3740 = vmatpush1.bf16.msra.mxu0 %v2442
    %3741 = vmatprep.subr.bf16.mxu0 0
    %3742 = vmatpush1.bf16.msra.mxu0 %v2435
    %3743 = vmatprep.subr.bf16.mxu0 0
    %3744 = vmatpush1.bf16.msra.mxu0 %v2428
    %3745 = vmatprep.subr.bf16.mxu0 0
    %3746 = vmatpush1.bf16.msra.mxu0 %v2421
    %3747 = vmatprep.subr.bf16.mxu0 0
    %3748 = vmatpush2.bf16.msra.mxu0 %v2526
    %3749 = vmatprep.subr.bf16.mxu0 0
    %3750 = vmatpush2.bf16.msra.mxu0 %v2519
    %3751 = vmatprep.subr.bf16.mxu0 0
    %3752 = vmatpush2.bf16.msra.mxu0 %v2512
    %3753 = vmatprep.subr.bf16.mxu0 0
    %3754 = vmatpush2.bf16.msra.mxu0 %v2505
    %3755 = vmatprep.subr.bf16.mxu0 0
    %3756 = vmatpush2.bf16.msra.mxu0 %v2498
    %3757 = vmatprep.subr.bf16.mxu0 0
    %3758 = vmatpush2.bf16.msra.mxu0 %v2491
    %3759 = vmatprep.subr.bf16.mxu0 0
    %3760 = vmatpush2.bf16.msra.mxu0 %v2484
    %3761 = vmatprep.subr.bf16.mxu0 0
    %3762 = vmatpush2.bf16.msra.mxu0 %v2477
    %3763 = vmatprep.mubr.bf16.mxu0 %v341
    %3764 = vmatmul.mubr.bf16.gmra.mxu0 %v340
    %v3765 = vpop.f32.mrf.mxu0
    %v3766 = vadd.f32 %v3726, %v3765
    %v3767 = vpop.f32.mrf.mxu0
    %v3768 = vpop.f32.mrf.mxu0
    %v3769 = vpop.f32.mrf.mxu0
    %3770 = vdwg.mxu0
    %3771 = vmatprep.subr.bf16.mxu0 0
    %3772 = vmatpush1.bf16.msra.mxu0 %v2582
    %3773 = vmatprep.subr.bf16.mxu0 0
    %3774 = vmatpush1.bf16.msra.mxu0 %v2575
    %3775 = vmatprep.subr.bf16.mxu0 0
    %3776 = vmatpush1.bf16.msra.mxu0 %v2568
    %3777 = vmatprep.subr.bf16.mxu0 0
    %3778 = vmatpush1.bf16.msra.mxu0 %v2561
    %3779 = vmatprep.subr.bf16.mxu0 0
    %3780 = vmatpush1.bf16.msra.mxu0 %v2554
    %3781 = vmatprep.subr.bf16.mxu0 0
    %3782 = vmatpush1.bf16.msra.mxu0 %v2547
    %3783 = vmatprep.subr.bf16.mxu0 0
    %3784 = vmatpush1.bf16.msra.mxu0 %v2540
    %3785 = vmatprep.subr.bf16.mxu0 0
    %3786 = vmatpush1.bf16.msra.mxu0 %v2533
    %3787 = vmatprep.subr.bf16.mxu0 0
    %3788 = vmatpush2.bf16.msra.mxu0 %v2638
    %3789 = vmatprep.subr.bf16.mxu0 0
    %3790 = vmatpush2.bf16.msra.mxu0 %v2631
    %3791 = vmatprep.subr.bf16.mxu0 0
    %3792 = vmatpush2.bf16.msra.mxu0 %v2624
    %3793 = vmatprep.subr.bf16.mxu0 0
    %3794 = vmatpush2.bf16.msra.mxu0 %v2617
    %3795 = vmatprep.subr.bf16.mxu0 0
    %3796 = vmatpush2.bf16.msra.mxu0 %v2610
    %3797 = vmatprep.subr.bf16.mxu0 0
    %3798 = vmatpush2.bf16.msra.mxu0 %v2603
    %3799 = vmatprep.subr.bf16.mxu0 0
    %3800 = vmatpush2.bf16.msra.mxu0 %v2596
    %3801 = vmatprep.subr.bf16.mxu0 0
    %3802 = vmatpush2.bf16.msra.mxu0 %v2589
    %3803 = vmatprep.mubr.bf16.mxu0 %v343
    %3804 = vmatmul.mubr.bf16.gmra.mxu0 %v342
    %v3805 = vpop.f32.mrf.mxu0
    %v3806 = vadd.f32 %v3766, %v3805
    %v3807 = vpop.f32.mrf.mxu0
    %v3808 = vpop.f32.mrf.mxu0
    %v3809 = vpop.f32.mrf.mxu0
    %3810 = vdwg.mxu0
    %3811 = vmatprep.subr.bf16.mxu0 0
    %3812 = vmatpush1.bf16.msra.mxu0 %v2694
    %3813 = vmatprep.subr.bf16.mxu0 0
    %3814 = vmatpush1.bf16.msra.mxu0 %v2687
    %3815 = vmatprep.subr.bf16.mxu0 0
    %3816 = vmatpush1.bf16.msra.mxu0 %v2680
    %3817 = vmatprep.subr.bf16.mxu0 0
    %3818 = vmatpush1.bf16.msra.mxu0 %v2673
    %3819 = vmatprep.subr.bf16.mxu0 0
    %3820 = vmatpush1.bf16.msra.mxu0 %v2666
    %3821 = vmatprep.subr.bf16.mxu0 0
    %3822 = vmatpush1.bf16.msra.mxu0 %v2659
    %3823 = vmatprep.subr.bf16.mxu0 0
    %3824 = vmatpush1.bf16.msra.mxu0 %v2652
    %3825 = vmatprep.subr.bf16.mxu0 0
    %3826 = vmatpush1.bf16.msra.mxu0 %v2645
    %3827 = vmatprep.subr.bf16.mxu0 0
    %3828 = vmatpush2.bf16.msra.mxu0 %v2750
    %3829 = vmatprep.subr.bf16.mxu0 0
    %3830 = vmatpush2.bf16.msra.mxu0 %v2743
    %3831 = vmatprep.subr.bf16.mxu0 0
    %3832 = vmatpush2.bf16.msra.mxu0 %v2736
    %3833 = vmatprep.subr.bf16.mxu0 0
    %3834 = vmatpush2.bf16.msra.mxu0 %v2729
    %3835 = vmatprep.subr.bf16.mxu0 0
    %3836 = vmatpush2.bf16.msra.mxu0 %v2722
    %3837 = vmatprep.subr.bf16.mxu0 0
    %3838 = vmatpush2.bf16.msra.mxu0 %v2715
    %3839 = vmatprep.subr.bf16.mxu0 0
    %3840 = vmatpush2.bf16.msra.mxu0 %v2708
    %3841 = vmatprep.subr.bf16.mxu0 0
    %3842 = vmatpush2.bf16.msra.mxu0 %v2701
    %3843 = vmatprep.mubr.bf16.mxu0 %v345
    %3844 = vmatmul.mubr.bf16.gmra.mxu0 %v344
    %v3845 = vpop.f32.mrf.mxu0
    %v3846 = vadd.f32 %v3806, %v3845
    %v3847 = vpop.f32.mrf.mxu0
    %v3848 = vpop.f32.mrf.mxu0
    %v3849 = vpop.f32.mrf.mxu0
    %3850 = vdwg.mxu0
    %v3851 = vxor.u32 %v3357, 2147483648
    %v3852 = vxor.u32 %v3359, 2147483648
    %v3853 = vxor.u32 %v3521, 2147483648
    %v3854 = vxor.u32 %v3523, 2147483648
    %v3855 = vxor.u32 %v3685, 2147483648
    %v3856 = vxor.u32 %v3687, 2147483648
    %v3857 = vxor.u32 %v3846, 2147483648
    %v3858 = vmul.f32 %v3851, 1.442695
    %v3859 = vpow.pop %v3858
    %v3860 = vmul.f32 %v3852, 1.442695
    %v3861 = vpow.pop %v3860
    %v3862 = vmul.f32 %v3853, 1.442695
    %v3863 = vpow.pop %v3862
    %v3864 = vmul.f32 %v3854, 1.442695
    %v3865 = vpow.pop %v3864
    %v3866 = vmul.f32 %v3855, 1.442695
    %v3867 = vpow.pop %v3866
    %v3868 = vmul.f32 %v3856, 1.442695
    %v3869 = vpow.pop %v3868
    %v3870 = vmul.f32 %v3857, 1.442695
    %v3871 = vpow.pop %v3870
    %v3872 = vadd.f32 %v3859, 1.0
    %v3873 = vadd.f32 %v3861, 1.0
    %v3874 = vadd.f32 %v3863, 1.0
    %v3875 = vadd.f32 %v3865, 1.0
    %v3876 = vadd.f32 %v3867, 1.0
    %v3877 = vadd.f32 %v3869, 1.0
    %v3878 = vadd.f32 %v3871, 1.0
    %v3879 = vrcp.pop %v3872
    %v3880 = vmul.f32 1.0, %v3879
    %v3881 = vrcp.pop %v3873
    %v3882 = vmul.f32 1.0, %v3881
    %v3883 = vrcp.pop %v3874
    %v3884 = vmul.f32 1.0, %v3883
    %v3885 = vrcp.pop %v3875
    %v3886 = vmul.f32 1.0, %v3885
    %v3887 = vrcp.pop %v3876
    %v3888 = vmul.f32 1.0, %v3887
    %v3889 = vrcp.pop %v3877
    %v3890 = vmul.f32 1.0, %v3889
    %v3891 = vrcp.pop %v3878
    %v3892 = vmul.f32 1.0, %v3891
    %3893 = vst [vmem:[#allocation2] sm:$0xff] %v3880
    %3894 = vst [vmem:[#allocation2 + $0x8] sm:$0xff] %v3882
    %3895 = vst [vmem:[#allocation2 + $0x10] sm:$0xff] %v3884
    %3896 = vst [vmem:[#allocation2 + $0x18] sm:$0xff] %v3886
    %3897 = vst [vmem:[#allocation2 + $0x20] sm:$0xff] %v3888
    %3898 = vst [vmem:[#allocation2 + $0x28] sm:$0xff] %v3890
    %3899 = vst [vmem:[#allocation2 + $0x30] sm:$0xff] %v3892
    // Predicated region
    $region22: #{fc_decoder_forward.1} parent=1 // pred_check
      _
    $region23: #{fc_decoder_forward.1} parent=1 // pred_check_branch
      %3901 = sbr.rel (0) target = $region25
    $region24: #{fc_decoder_forward.1} parent=1 // pred_region
      %s3903 = ssub.s32 896, 896
      %3904 = vsyncadd [#allocation3], %s3903
      %s3906 = sshll.u32 [#allocation2], 4
      %s3907 = int_to_ptr.vmem [resolvable:$true] %s3906
      %3909 = dma.vmem_to_hbm [thread:$0]  %s3907, 896, %s5, [#allocation3]
    $region25: #{fc_decoder_forward.1} parent=1 // pred_fallthru
      _
    // Predicated region
    $region26: #{fc_decoder_forward.1} parent=1 // pred_check
      _
    $region27: #{fc_decoder_forward.1} parent=1 // pred_check_branch
      %3911 = sbr.rel (0) target = $region29
    $region28: #{fc_decoder_forward.1} parent=1 // pred_region
      %3912 = dma.done [#allocation3], 896
    $region29: #{fc_decoder_forward.1} parent=1 // pred_fallthru
      _
    %3913 = vsyncpa [#allocation3], 1

</llo_original>
